<compile_context>
chip_gen: v7x
topology: tpu7x:2x2x1
jax: 0.10.0
libtpu: 0.0.40
codegen_flags: <defaults>
</compile_context>

<pallas_src>
import functools

import jax
import jax.numpy as jnp
from jax.experimental import pallas as pl
from jax.experimental.pallas import tpu as pltpu

HIDDEN = 300        # logical hidden width (PyTorch module)
HIDDEN_PAD = 384    # padded to a multiple of 128 for lane alignment
OUT_PAD = 128       # lane-dense output slab; column 0 holds the real result
EPS = 1e-5

MAX_BLOCK_B = 1024              # upper tile cap (amortizes ~0.35us/step)
VMEM_BUDGET = 26 * 1024 * 1024  # keep resident working set under this
VMEM_LIMIT = 32 * 1024 * 1024   # raise scoped VMEM (v5e default is 16 MiB)


def _round_up(x, m):
    return (x + m - 1) // m * m


def _cdiv(a, b):
    return -(-a // b)


# ---------------------------------------------------------------------------
# Kernel: fused 4-layer MLP on one batch tile.  All parameters are full-array
# VMEM blocks resident across the batch-tiled grid (constant index_map).
# ---------------------------------------------------------------------------
def dnn_kernel(x_ref,
               w1_ref, b1_ref,
               w2_ref, b2_ref,
               w3_ref, b3_ref,
               w4_ref, b4_ref,
               o_ref):
    cdt = w1_ref.dtype                       # bf16 (default) or f32
    h = x_ref[...]                           # already in compute dtype

    def layer(h, w_ref, b_ref):
        # Linear with eval-mode BN folded in; f32 accumulation on the MXU.
        z = jnp.dot(h, w_ref[...], preferred_element_type=jnp.float32)
        z = z + b_ref[...]                   # bias kept in f32
        # ReLU; Dropout(0.4) is identity in eval mode.
        return jnp.maximum(z, 0.0).astype(cdt)

    h = layer(h, w1_ref, b1_ref)
    h = layer(h, w2_ref, b2_ref)
    h = layer(h, w3_ref, b3_ref)
    # Final Linear; N padded to 128 -> full-lane unmasked vst.  Store in the
    # compute dtype to halve HBM writeback (f32 accumulation before the cast).
    o_ref[...] = (jnp.dot(h, w4_ref[...], preferred_element_type=jnp.float32)
                  + b4_ref[...]).astype(o_ref.dtype)


# ---------------------------------------------------------------------------
# Raw parameters mirroring a freshly-initialized PyTorch module.
# Linear weights are stored transposed as (in_features, out_features).
# ---------------------------------------------------------------------------
def init_params(key, input_dim):
    def linear(key, fan_in, fan_out):
        k_w, k_b = jax.random.split(key)
        bound = 1.0 / jnp.sqrt(jnp.float32(fan_in))
        w = jax.random.uniform(k_w, (fan_in, fan_out), jnp.float32, -bound, bound)
        b = jax.random.uniform(k_b, (1, fan_out), jnp.float32, -bound, bound)
        return w, b

    def bn(dim):
        # fresh nn.BatchNorm1d: weight=1, bias=0, running_mean=0, running_var=1
        return (jnp.ones((1, dim), jnp.float32),   # gamma
                jnp.zeros((1, dim), jnp.float32),  # beta
                jnp.zeros((1, dim), jnp.float32),  # running_mean
                jnp.ones((1, dim), jnp.float32))   # running_var

    keys = jax.random.split(key, 4)
    w1, b1 = linear(keys[0], input_dim, HIDDEN)
    w2, b2 = linear(keys[1], HIDDEN, HIDDEN)
    w3, b3 = linear(keys[2], HIDDEN, HIDDEN)
    w4, b4 = linear(keys[3], HIDDEN, 1)
    g1, be1, m1, v1 = bn(HIDDEN)
    g2, be2, m2, v2 = bn(HIDDEN)
    g3, be3, m3, v3 = bn(HIDDEN)
    return (w1, b1, g1, be1, m1, v1,
            w2, b2, g2, be2, m2, v2,
            w3, b3, g3, be3, m3, v3,
            w4, b4)


# ---------------------------------------------------------------------------
# One-time parameter prep: fold eval-mode BatchNorm into the Linear layers,
# zero-pad to lane-aligned shapes, cast weights to the compute dtype
# (bf16 by default — MXU-native on v5e/v6e/v7x; f32 accumulation in-kernel).
# Zero padding keeps the math exact: padded hidden units compute relu(0)=0 and
# contribute nothing downstream; padded output columns are sliced off.
# ---------------------------------------------------------------------------
def fold_and_pad_params(raw_params, compute_dtype=jnp.bfloat16):
    (w1, b1, g1, be1, m1, v1,
     w2, b2, g2, be2, m2, v2,
     w3, b3, g3, be3, m3, v3,
     w4, b4) = raw_params

    def fold(w, b, g, be, m, v):
        scale = g * jax.lax.rsqrt(v + EPS)              # (1, H)
        return w * scale, (b - m) * scale + be          # W'[:,j]=W[:,j]*s[j]

    def pad(a, rows, cols):
        return jnp.pad(a, ((0, rows - a.shape[0]), (0, cols - a.shape[1])))

    w1f, b1f = fold(w1, b1, g1, be1, m1, v1)
    w2f, b2f = fold(w2, b2, g2, be2, m2, v2)
    w3f, b3f = fold(w3, b3, g3, be3, m3, v3)

    din = w1.shape[0]
    w1p = pad(w1f, din, HIDDEN_PAD).astype(compute_dtype)
    w2p = pad(w2f, HIDDEN_PAD, HIDDEN_PAD).astype(compute_dtype)
    w3p = pad(w3f, HIDDEN_PAD, HIDDEN_PAD).astype(compute_dtype)
    w4p = pad(w4, HIDDEN_PAD, OUT_PAD).astype(compute_dtype)
    b1p = pad(b1f, 1, HIDDEN_PAD)                        # biases stay f32
    b2p = pad(b2f, 1, HIDDEN_PAD)
    b3p = pad(b3f, 1, HIDDEN_PAD)
    b4p = pad(b4, 1, OUT_PAD)
    return (w1p, b1p, w2p, b2p, w3p, b3p, w4p, b4p)


def _choose_block_b(B, D, params, x_itemsize, out_itemsize):
    """Balanced, VMEM-aware batch tile.

    - Keeps (2x double-buffered params + 2x x-tile + 2x out-tile) under
      VMEM_BUDGET so the kernel fits every generation incl. v7x (64 MiB).
    - Uses >=2 (and an even number of) grid steps so the "parallel" batch axis
      shards across both v7x TensorCores.
    - Balances tiles so last-tile zero-padding stays within a handful of rows,
      and prefers an exact divisor of B (skips the jnp.pad copy of x).
    """
    param_bytes = 2 * sum(int(p.size) * p.dtype.itemsize for p in params)
    per_row = 2 * (D * x_itemsize + OUT_PAD * out_itemsize)
    max_rows = (VMEM_BUDGET - param_bytes) // per_row
    max_rows = max(8, min(MAX_BLOCK_B, (max_rows // 8) * 8))

    min_steps = 2 if B >= 16 else 1
    steps = max(min_steps, _cdiv(B, max_rows))
    if steps > 1 and steps % 2:
        steps += 1                      # even step count -> both v7x TCs busy
    block_b = _round_up(_cdiv(B, steps), 8)

    # Prefer an exactly-dividing tile near the balanced size (no x padding).
    if B % block_b:
        for cand in range(block_b, max(block_b // 2, 8) - 1, -8):
            if B % cand == 0:
                block_b = cand
                break
    return block_b


@functools.partial(jax.jit, static_argnames=("block_b",))
def dnn_forward(x, params, *, block_b=None):
    B, D = x.shape
    cdt = params[0].dtype                          # compute dtype (bf16/f32)
    x = x.astype(cdt)                              # stream x in compute dtype

    if block_b is None:
        block_b = _choose_block_b(B, D, params,
                                  jnp.dtype(cdt).itemsize,
                                  jnp.dtype(cdt).itemsize)
    Bp = _round_up(B, block_b)
    if Bp != B:
        x = jnp.pad(x, ((0, Bp - B), (0, 0)))      # small, balanced pad only

    def full_spec(arr):
        # Full-array block, constant index_map -> resident in VMEM all grid.
        return pl.BlockSpec(arr.shape, lambda i: (0,) * arr.ndim)

    in_specs = [pl.BlockSpec((block_b, D), lambda i: (i, 0))]
    in_specs += [full_spec(p) for p in params]
    out_specs = pl.BlockSpec((block_b, OUT_PAD), lambda i: (i, 0))

    out = pl.pallas_call(
        dnn_kernel,
        out_shape=jax.ShapeDtypeStruct((Bp, OUT_PAD), cdt),
        grid_spec=pltpu.PrefetchScalarGridSpec(
            num_scalar_prefetch=0,
            grid=(Bp // block_b,),
            in_specs=in_specs,
            out_specs=out_specs,
        ),
        compiler_params=pltpu.CompilerParams(
            dimension_semantics=("parallel",),
            vmem_limit_bytes=VMEM_LIMIT),
    )(x, *params)

    return out[:B, :1].astype(jnp.float32)


# ---------------------------------------------------------------------------
# Pure-JAX reference using the RAW (unfolded, unpadded) parameters.
# ---------------------------------------------------------------------------
def dnn_forward_ref(x, raw_params):
    (w1, b1, g1, be1, m1, v1,
     w2, b2, g2, be2, m2, v2,
     w3, b3, g3, be3, m3, v3,
     w4, b4) = raw_params

    def layer(h, w, b, g, be, m, v):
        z = h @ w + b
        z = (z - m) * jax.lax.rsqrt(v + EPS) * g + be
        return jnp.maximum(z, 0.0)

    h = layer(x, w1, b1, g1, be1, m1, v1)
    h = layer(h, w2, b2, g2, be2, m2, v2)
    h = layer(h, w3, b3, g3, be3, m3, v3)
    return h @ w4 + b4


if __name__ == "__main__":
    batch, input_dim = 8, 32
    key = jax.random.PRNGKey(0)
    k_x, k_p = jax.random.split(key)

    x = jax.random.normal(k_x, (batch, input_dim), jnp.float32)
    raw = init_params(k_p, input_dim)
    ref = dnn_forward_ref(x, raw)

    # f32 path (tight numerical check)
    params_f32 = fold_and_pad_params(raw, jnp.float32)
    out = jax.block_until_ready(dnn_forward(x, params_f32))
    assert out.shape == (batch, 1), out.shape
    assert jnp.allclose(out, ref, atol=1e-4, rtol=1e-4), (
        float(jnp.max(jnp.abs(out - ref))))

    # bf16 default fast path: bf16 weights/activations/writeback, f32 MXU acc.
    params_bf16 = fold_and_pad_params(raw)         # bf16 is the default
    out_bf16 = jax.block_until_ready(dnn_forward(x, params_bf16))
    assert out_bf16.shape == (batch, 1), out_bf16.shape
    rel_err = float(jnp.max(jnp.abs(out_bf16 - ref))
                    / (jnp.max(jnp.abs(ref)) + 1e-6))
    assert rel_err < 5e-2, rel_err

    print("KERNEL_OK")
</pallas_src>

<mosaic_0001>
module attributes {stable_mosaic.version = 11 : i64} {
  func.func @dnn_kernel(%arg0: i32, %arg1: memref<8x32xf32, #tpu.memory_space<vmem>>, %arg2: memref<32x384xf32, #tpu.memory_space<vmem>>, %arg3: memref<1x384xf32, #tpu.memory_space<vmem>>, %arg4: memref<384x384xf32, #tpu.memory_space<vmem>>, %arg5: memref<1x384xf32, #tpu.memory_space<vmem>>, %arg6: memref<384x384xf32, #tpu.memory_space<vmem>>, %arg7: memref<1x384xf32, #tpu.memory_space<vmem>>, %arg8: memref<384x128xf32, #tpu.memory_space<vmem>>, %arg9: memref<1x128xf32, #tpu.memory_space<vmem>>, %arg10: memref<8x128xf32, #tpu.memory_space<vmem>>) attributes {dimension_semantics = [#tpu.dimension_semantics<parallel>], iteration_bounds = array<i64: 1>, scalar_prefetch = 0 : i64, scratch_operands = 0 : i64, tpu.core_type = #tpu.core_type<tc>, window_params = [{transform_indices = @transform_0, window_bounds = array<i64: 8, 32>}, {pipeline_mode = #tpu.pipeline_mode<synchronous>, transform_indices = @transform_1, window_bounds = array<i64: 32, 384>}, {pipeline_mode = #tpu.pipeline_mode<synchronous>, transform_indices = @transform_2, window_bounds = array<i64: 1, 384>}, {pipeline_mode = #tpu.pipeline_mode<synchronous>, transform_indices = @transform_3, window_bounds = array<i64: 384, 384>}, {pipeline_mode = #tpu.pipeline_mode<synchronous>, transform_indices = @transform_4, window_bounds = array<i64: 1, 384>}, {pipeline_mode = #tpu.pipeline_mode<synchronous>, transform_indices = @transform_5, window_bounds = array<i64: 384, 384>}, {pipeline_mode = #tpu.pipeline_mode<synchronous>, transform_indices = @transform_6, window_bounds = array<i64: 1, 384>}, {pipeline_mode = #tpu.pipeline_mode<synchronous>, transform_indices = @transform_7, window_bounds = array<i64: 384, 128>}, {pipeline_mode = #tpu.pipeline_mode<synchronous>, transform_indices = @transform_8, window_bounds = array<i64: 1, 128>}, {transform_indices = @transform_9, window_bounds = array<i64: 8, 128>}]} {
    %c0 = arith.constant 0 : index
    %c0_0 = arith.constant 0 : index
    %0 = vector.load %arg1[%c0, %c0_0] : memref<8x32xf32, #tpu.memory_space<vmem>>, vector<8x32xf32>
    %c0_1 = arith.constant 0 : index
    %c0_2 = arith.constant 0 : index
    %1 = vector.load %arg2[%c0_1, %c0_2] : memref<32x384xf32, #tpu.memory_space<vmem>>, vector<32x384xf32>
    %cst = arith.constant dense<0.000000e+00> : vector<8x384xf32>
    %2 = tpu.matmul %0, %1, %cst {dimension_numbers = #tpu.dot_dimension_numbers<[1], [0], [0], [1], [0, 0, 1, 1], [], []>} : vector<8x32xf32>, vector<32x384xf32>, vector<8x384xf32> -> vector<8x384xf32>
    %c0_3 = arith.constant 0 : index
    %c0_4 = arith.constant 0 : index
    %3 = vector.load %arg3[%c0_3, %c0_4] : memref<1x384xf32, #tpu.memory_space<vmem>>, vector<1x384xf32>
    %4 = vector.broadcast %3 : vector<1x384xf32> to vector<8x384xf32>
    %5 = arith.addf %2, %4 : vector<8x384xf32>
    %cst_5 = arith.constant 0.000000e+00 : f32
    %6 = vector.broadcast %cst_5 : f32 to vector<8x384xf32>
    %7 = arith.maximumf %5, %6 : vector<8x384xf32>
    %c0_6 = arith.constant 0 : index
    %c0_7 = arith.constant 0 : index
    %8 = vector.load %arg4[%c0_6, %c0_7] : memref<384x384xf32, #tpu.memory_space<vmem>>, vector<384x384xf32>
    %cst_8 = arith.constant dense<0.000000e+00> : vector<8x384xf32>
    %9 = tpu.matmul %7, %8, %cst_8 {dimension_numbers = #tpu.dot_dimension_numbers<[1], [0], [0], [1], [0, 0, 1, 1], [], []>} : vector<8x384xf32>, vector<384x384xf32>, vector<8x384xf32> -> vector<8x384xf32>
    %c0_9 = arith.constant 0 : index
    %c0_10 = arith.constant 0 : index
    %10 = vector.load %arg5[%c0_9, %c0_10] : memref<1x384xf32, #tpu.memory_space<vmem>>, vector<1x384xf32>
    %11 = vector.broadcast %10 : vector<1x384xf32> to vector<8x384xf32>
    %12 = arith.addf %9, %11 : vector<8x384xf32>
    %cst_11 = arith.constant 0.000000e+00 : f32
    %13 = vector.broadcast %cst_11 : f32 to vector<8x384xf32>
    %14 = arith.maximumf %12, %13 : vector<8x384xf32>
    %c0_12 = arith.constant 0 : index
    %c0_13 = arith.constant 0 : index
    %15 = vector.load %arg6[%c0_12, %c0_13] : memref<384x384xf32, #tpu.memory_space<vmem>>, vector<384x384xf32>
    %cst_14 = arith.constant dense<0.000000e+00> : vector<8x384xf32>
    %16 = tpu.matmul %14, %15, %cst_14 {dimension_numbers = #tpu.dot_dimension_numbers<[1], [0], [0], [1], [0, 0, 1, 1], [], []>} : vector<8x384xf32>, vector<384x384xf32>, vector<8x384xf32> -> vector<8x384xf32>
    %c0_15 = arith.constant 0 : index
    %c0_16 = arith.constant 0 : index
    %17 = vector.load %arg7[%c0_15, %c0_16] : memref<1x384xf32, #tpu.memory_space<vmem>>, vector<1x384xf32>
    %18 = vector.broadcast %17 : vector<1x384xf32> to vector<8x384xf32>
    %19 = arith.addf %16, %18 : vector<8x384xf32>
    %cst_17 = arith.constant 0.000000e+00 : f32
    %20 = vector.broadcast %cst_17 : f32 to vector<8x384xf32>
    %21 = arith.maximumf %19, %20 : vector<8x384xf32>
    %c0_18 = arith.constant 0 : index
    %c0_19 = arith.constant 0 : index
    %22 = vector.load %arg8[%c0_18, %c0_19] : memref<384x128xf32, #tpu.memory_space<vmem>>, vector<384x128xf32>
    %cst_20 = arith.constant dense<0.000000e+00> : vector<8x128xf32>
    %23 = tpu.matmul %21, %22, %cst_20 {dimension_numbers = #tpu.dot_dimension_numbers<[1], [0], [0], [1], [0, 0, 1, 1], [], []>} : vector<8x384xf32>, vector<384x128xf32>, vector<8x128xf32> -> vector<8x128xf32>
    %c0_21 = arith.constant 0 : index
    %c0_22 = arith.constant 0 : index
    %24 = vector.load %arg9[%c0_21, %c0_22] : memref<1x128xf32, #tpu.memory_space<vmem>>, vector<1x128xf32>
    %25 = vector.broadcast %24 : vector<1x128xf32> to vector<8x128xf32>
    %26 = arith.addf %23, %25 : vector<8x128xf32>
    %c0_23 = arith.constant 0 : index
    %c0_24 = arith.constant 0 : index
    %27 = vector.load %arg10[%c0_23, %c0_24] : memref<8x128xf32, #tpu.memory_space<vmem>>, vector<8x128xf32>
    tpu.vector_store %arg10[%c0_23, %c0_24], %26 {strides = array<i32>} : memref<8x128xf32, #tpu.memory_space<vmem>>, vector<8x128xf32>,
    return
  }
  func.func @transform_0(%arg0: i32) -> (i32, i32) {
    %c0_i32 = arith.constant 0 : i32
    %c0_i32_0 = arith.constant 0 : i32
    return %arg0, %c0_i32 : i32, i32
  }
  func.func @transform_1(%arg0: i32) -> (i32, i32) {
    %c0_i32 = arith.constant 0 : i32
    %c0_i32_0 = arith.constant 0 : i32
    %c0_i32_1 = arith.constant 0 : i32
    return %c0_i32, %c0_i32_0 : i32, i32
  }
  func.func @transform_2(%arg0: i32) -> (i32, i32) {
    %c0_i32 = arith.constant 0 : i32
    %c0_i32_0 = arith.constant 0 : i32
    %c0_i32_1 = arith.constant 0 : i32
    return %c0_i32, %c0_i32_0 : i32, i32
  }
  func.func @transform_3(%arg0: i32) -> (i32, i32) {
    %c0_i32 = arith.constant 0 : i32
    %c0_i32_0 = arith.constant 0 : i32
    %c0_i32_1 = arith.constant 0 : i32
    return %c0_i32, %c0_i32_0 : i32, i32
  }
  func.func @transform_4(%arg0: i32) -> (i32, i32) {
    %c0_i32 = arith.constant 0 : i32
    %c0_i32_0 = arith.constant 0 : i32
    %c0_i32_1 = arith.constant 0 : i32
    return %c0_i32, %c0_i32_0 : i32, i32
  }
  func.func @transform_5(%arg0: i32) -> (i32, i32) {
    %c0_i32 = arith.constant 0 : i32
    %c0_i32_0 = arith.constant 0 : i32
    %c0_i32_1 = arith.constant 0 : i32
    return %c0_i32, %c0_i32_0 : i32, i32
  }
  func.func @transform_6(%arg0: i32) -> (i32, i32) {
    %c0_i32 = arith.constant 0 : i32
    %c0_i32_0 = arith.constant 0 : i32
    %c0_i32_1 = arith.constant 0 : i32
    return %c0_i32, %c0_i32_0 : i32, i32
  }
  func.func @transform_7(%arg0: i32) -> (i32, i32) {
    %c0_i32 = arith.constant 0 : i32
    %c0_i32_0 = arith.constant 0 : i32
    %c0_i32_1 = arith.constant 0 : i32
    return %c0_i32, %c0_i32_0 : i32, i32
  }
  func.func @transform_8(%arg0: i32) -> (i32, i32) {
    %c0_i32 = arith.constant 0 : i32
    %c0_i32_0 = arith.constant 0 : i32
    %c0_i32_1 = arith.constant 0 : i32
    return %c0_i32, %c0_i32_0 : i32, i32
  }
  func.func @transform_9(%arg0: i32) -> (i32, i32) {
    %c0_i32 = arith.constant 0 : i32
    %c0_i32_0 = arith.constant 0 : i32
    return %arg0, %c0_i32 : i32, i32
  }
}

</mosaic_0001>

<llo_original>
// kernel: dnn_forward.1
$region0: #{dnn_forward.1}
  #allocation0 [shape = 'u32[]', space=smem, size = 0x4, offset = 0x4, fixed_abs, tag = 'smem constant byte address 0x4 - core index']
  #allocation1 [shape = 'u32[144,128]{1,0:T(1,128)}', space=vmem, size = 0x12000, scoped, tag = 'internal scratch']
  %s0 = inlined_call_operand.hbm [shape: f32[8,32], index: 0, kind: input, shape index: {}]
  %s1 = inlined_call_operand.hbm [shape: f32[32,384], index: 1, kind: input, shape index: {}]
  %s2 = inlined_call_operand.vmem [shape: f32[1,384], index: 2, kind: input, shape index: {}]
  %s3 = inlined_call_operand.hbm [shape: f32[384,384], index: 3, kind: input, shape index: {}]
  %s4 = inlined_call_operand.vmem [shape: f32[1,384], index: 4, kind: input, shape index: {}]
  %s5 = inlined_call_operand.hbm [shape: f32[384,384], index: 5, kind: input, shape index: {}]
  %s6 = inlined_call_operand.vmem [shape: f32[1,384], index: 6, kind: input, shape index: {}]
  %s7 = inlined_call_operand.hbm [shape: f32[384,128], index: 7, kind: input, shape index: {}]
  %s8 = inlined_call_operand.vmem [shape: f32[1,128], index: 8, kind: input, shape index: {}]
  %s9 = inlined_call_operand.vmem [shape: f32[8,128], index: 9, kind: output, shape index: {}]
  %s10 = sld [smem:[#allocation0]]
  $region66: #{dnn_forward.1} parent=0
    _
  %s12 = ssub.s32 1, %s10
  %s13 = scalar_select 0, %s12, %s10
  $region1: #{dnn_forward.1} parent=0
    #allocation2 [shape = 'u8[4096]{0}', space=vmem, size = 0x1000, scoped, tag = 'input window, operand 0, single buffered']
    #allocation3 [shape = 's32[1]{0}', space=sflag, size = 0x4, scoped, tag = 'scoped memory for dnn_forward.1']
    #allocation4 [shape = 'u8[49152]{0}', space=vmem, size = 0xc000, scoped, tag = 'input window, operand 1, single buffered']
    #allocation5 [shape = 's32[1]{0}', space=sflag, size = 0x4, scoped, tag = 'scoped memory for dnn_forward.1']
    #allocation6 [shape = 'u8[589824]{0}', space=vmem, size = 0x90000, scoped, tag = 'input window, operand 3, single buffered']
    #allocation7 [shape = 'u8[589824]{0}', space=vmem, size = 0x90000, scoped, tag = 'input window, operand 5, single buffered']
    #allocation8 [shape = 's32[1]{0}', space=sflag, size = 0x4, scoped, tag = 'scoped memory for dnn_forward.1']
    #allocation9 [shape = 'u8[196608]{0}', space=vmem, size = 0x30000, scoped, tag = 'input window, operand 7, single buffered']
    %14 = vsyncpa [#allocation3], 0
    %15 = vsyncpa [#allocation5], 0
    %16 = vsyncpa [#allocation8], 0
    // Predicated region
    $region2: #{dnn_forward.1} parent=1 // pred_check
      _
    $region3: #{dnn_forward.1} parent=1 // pred_check_branch
      %18 = sbr.rel (0) target = $region5
    $region4: #{dnn_forward.1} parent=1 // pred_region
      %s20 = ssub.s32 128, 128
      %21 = vsyncadd [#allocation3], %s20
      %s23 = sshll.u32 [#allocation2], 4
      %s24 = int_to_ptr.vmem [resolvable:$true] %s23
      %26 = dma.hbm_to_vmem [thread:$0]  %s0, 128, %s24, [#allocation3]
    $region5: #{dnn_forward.1} parent=1 // pred_fallthru
      _
    // Predicated region
    $region6: #{dnn_forward.1} parent=1 // pred_check
      _
    $region7: #{dnn_forward.1} parent=1 // pred_check_branch
      %28 = sbr.rel (0) target = $region9
    $region8: #{dnn_forward.1} parent=1 // pred_region
      %s30 = ssub.s32 1536, 1536
      %31 = vsyncadd [#allocation5], %s30
      %s32 = sshll.u32 [#allocation4], 4
      %s33 = int_to_ptr.vmem [resolvable:$true] %s32
      %38 = dma.hbm_to_vmem [thread:$0]  %s1, 1536, %s33, [#allocation5], 384, 384, 24
    $region9: #{dnn_forward.1} parent=1 // pred_fallthru
      _
    // Predicated region
    $region10: #{dnn_forward.1} parent=1 // pred_check
      _
    $region11: #{dnn_forward.1} parent=1 // pred_check_branch
      %40 = sbr.rel (0) target = $region13
    $region12: #{dnn_forward.1} parent=1 // pred_region
      _
    $region13: #{dnn_forward.1} parent=1 // pred_fallthru
      _
    // Predicated region
    $region14: #{dnn_forward.1} parent=1 // pred_check
      _
    $region15: #{dnn_forward.1} parent=1 // pred_check_branch
      %42 = sbr.rel (0) target = $region17
    $region16: #{dnn_forward.1} parent=1 // pred_region
      %s44 = ssub.s32 18432, 18432
      %45 = vsyncadd [#allocation5], %s44
      %s46 = sshll.u32 [#allocation6], 4
      %s47 = int_to_ptr.vmem [resolvable:$true] %s46
      %52 = dma.hbm_to_vmem [thread:$0]  %s3, 18432, %s47, [#allocation5], 384, 384, 24
    $region17: #{dnn_forward.1} parent=1 // pred_fallthru
      _
    // Predicated region
    $region18: #{dnn_forward.1} parent=1 // pred_check
      _
    $region19: #{dnn_forward.1} parent=1 // pred_check_branch
      %54 = sbr.rel (0) target = $region21
    $region20: #{dnn_forward.1} parent=1 // pred_region
      _
    $region21: #{dnn_forward.1} parent=1 // pred_fallthru
      _
    // Predicated region
    $region22: #{dnn_forward.1} parent=1 // pred_check
      _
    $region23: #{dnn_forward.1} parent=1 // pred_check_branch
      %56 = sbr.rel (0) target = $region25
    $region24: #{dnn_forward.1} parent=1 // pred_region
      %s58 = ssub.s32 18432, 18432
      %59 = vsyncadd [#allocation8], %s58
      %s60 = sshll.u32 [#allocation7], 4
      %s61 = int_to_ptr.vmem [resolvable:$true] %s60
      %66 = dma.hbm_to_vmem [thread:$0]  %s5, 18432, %s61, [#allocation8], 384, 384, 24
    $region25: #{dnn_forward.1} parent=1 // pred_fallthru
      _
    // Predicated region
    $region26: #{dnn_forward.1} parent=1 // pred_check
      _
    $region27: #{dnn_forward.1} parent=1 // pred_check_branch
      %68 = sbr.rel (0) target = $region29
    $region28: #{dnn_forward.1} parent=1 // pred_region
      _
    $region29: #{dnn_forward.1} parent=1 // pred_fallthru
      _
    // Predicated region
    $region30: #{dnn_forward.1} parent=1 // pred_check
      _
    $region31: #{dnn_forward.1} parent=1 // pred_check_branch
      %70 = sbr.rel (0) target = $region33
    $region32: #{dnn_forward.1} parent=1 // pred_region
      %s72 = ssub.s32 6144, 6144
      %73 = vsyncadd [#allocation8], %s72
      %s74 = sshll.u32 [#allocation9], 4
      %s75 = int_to_ptr.vmem [resolvable:$true] %s74
      %80 = dma.hbm_to_vmem [thread:$0]  %s7, 6144, %s75, [#allocation8], 128, 128, 8
    $region33: #{dnn_forward.1} parent=1 // pred_fallthru
      _
    // Predicated region
    $region34: #{dnn_forward.1} parent=1 // pred_check
      _
    $region35: #{dnn_forward.1} parent=1 // pred_check_branch
      %82 = sbr.rel (0) target = $region37
    $region36: #{dnn_forward.1} parent=1 // pred_region
      _
    $region37: #{dnn_forward.1} parent=1 // pred_fallthru
      _
    // Predicated region
    $region38: #{dnn_forward.1} parent=1 // pred_check
      _
    $region39: #{dnn_forward.1} parent=1 // pred_check_branch
      %84 = sbr.rel (0) target = $region41
    $region40: #{dnn_forward.1} parent=1 // pred_region
      %85 = dma.done [#allocation3], 128
    $region41: #{dnn_forward.1} parent=1 // pred_fallthru
      _
    // Predicated region
    $region42: #{dnn_forward.1} parent=1 // pred_check
      _
    $region43: #{dnn_forward.1} parent=1 // pred_check_branch
      %87 = sbr.rel (0) target = $region45
    $region44: #{dnn_forward.1} parent=1 // pred_region
      %88 = dma.done [#allocation5], 1536
    $region45: #{dnn_forward.1} parent=1 // pred_fallthru
      _
    // Predicated region
    $region46: #{dnn_forward.1} parent=1 // pred_check
      _
    $region47: #{dnn_forward.1} parent=1 // pred_check_branch
      %90 = sbr.rel (0) target = $region49
    $region48: #{dnn_forward.1} parent=1 // pred_region
      %91 = dma.done [#allocation5], 18432
    $region49: #{dnn_forward.1} parent=1 // pred_fallthru
      _
    // Predicated region
    $region50: #{dnn_forward.1} parent=1 // pred_check
      _
    $region51: #{dnn_forward.1} parent=1 // pred_check_branch
      %93 = sbr.rel (0) target = $region53
    $region52: #{dnn_forward.1} parent=1 // pred_region
      %94 = dma.done [#allocation8], 18432
    $region53: #{dnn_forward.1} parent=1 // pred_fallthru
      _
    // Predicated region
    $region54: #{dnn_forward.1} parent=1 // pred_check
      _
    $region55: #{dnn_forward.1} parent=1 // pred_check_branch
      %96 = sbr.rel (0) target = $region57
    $region56: #{dnn_forward.1} parent=1 // pred_region
      %97 = dma.done [#allocation8], 6144
    $region57: #{dnn_forward.1} parent=1 // pred_fallthru
      _
    %v98 = vld [vmem:[#allocation2] sm:$0xff]
    %v99 = vld [vmem:[#allocation4] sm:$0xff]
    %v100 = vld [vmem:[#allocation4 + $0x8] sm:$0xff]
    %v101 = vld [vmem:[#allocation4 + $0x10] sm:$0xff]
    %v102 = vld [vmem:[#allocation4 + $0x18] sm:$0xff]
    %v103 = vld [vmem:[#allocation4 + $0x20] sm:$0xff]
    %v104 = vld [vmem:[#allocation4 + $0x28] sm:$0xff]
    %v105 = vld [vmem:[#allocation4 + $0x30] sm:$0xff]
    %v106 = vld [vmem:[#allocation4 + $0x38] sm:$0xff]
    %v107 = vld [vmem:[#allocation4 + $0x40] sm:$0xff]
    %v108 = vld [vmem:[#allocation4 + $0x48] sm:$0xff]
    %v109 = vld [vmem:[#allocation4 + $0x50] sm:$0xff]
    %v110 = vld [vmem:[#allocation4 + $0x58] sm:$0xff]
    %v111 = vld [vmem:[%s2] sm:$0x7]
    %v113 = vlaneseq
    %v114 = vshrl.u32 %v113, 7
    %v115 = vsub.s32 0, %v114
    %v116 = vrot.slane %v111, %v115
    %v117 = vlaneseq
    %v118 = vshrl.u32 %v117, 7
    %v119 = vsub.s32 1, %v118
    %v120 = vrot.slane %v111, %v119
    %v121 = vlaneseq
    %v122 = vshrl.u32 %v121, 7
    %v123 = vsub.s32 2, %v122
    %v124 = vrot.slane %v111, %v123
    %vm128 = vcmask 261120
    %v130 = vsel %vm128, %v98, 0
    %132 = vmatprep.subr.mxu0 %v100
    %133 = vmatpush1.msra.mxu0 %v99
    %134 = vmatprep.subr.mxu0 %v103
    %135 = vmatpush1.msra.mxu0 %v102
    %136 = vmatprep.subr.mxu0 %v106
    %137 = vmatpush1.msra.mxu0 %v105
    %138 = vmatprep.subr.mxu0 %v109
    %139 = vmatpush1.msra.mxu0 %v108
    %140 = vmatprep.subr.mxu0 0.0
    %141 = vmatpush1.msra.mxu0 0.0
    %142 = vmatprep.subr.mxu0 0.0
    %143 = vmatpush1.msra.mxu0 0.0
    %144 = vmatprep.subr.mxu0 0.0
    %145 = vmatpush1.msra.mxu0 0.0
    %146 = vmatprep.subr.mxu0 0.0
    %147 = vmatpush1.msra.mxu0 0.0
    %148 = vmatprep.subr.mxu0 0.0
    %149 = vmatpush1.msra.mxu0 0.0
    %150 = vmatprep.subr.mxu0 0.0
    %151 = vmatpush1.msra.mxu0 0.0
    %152 = vmatprep.subr.mxu0 0.0
    %153 = vmatpush1.msra.mxu0 0.0
    %154 = vmatprep.subr.mxu0 0.0
    %155 = vmatpush1.msra.mxu0 0.0
    %156 = vmatprep.subr.mxu0 0.0
    %157 = vmatpush1.msra.mxu0 0.0
    %158 = vmatprep.subr.mxu0 0.0
    %159 = vmatpush1.msra.mxu0 0.0
    %160 = vmatprep.subr.mxu0 0.0
    %161 = vmatpush1.msra.mxu0 0.0
    %162 = vmatprep.subr.mxu0 0.0
    %163 = vmatpush1.msra.mxu0 0.0
    %164 = vmatprep.subr.mxu0 0.0
    %165 = vmatpush1.msra.mxu0 0.0
    %166 = vmatprep.subr.mxu0 0.0
    %167 = vmatpush1.msra.mxu0 0.0
    %168 = vmatprep.subr.mxu0 0.0
    %169 = vmatpush1.msra.mxu0 0.0
    %170 = vmatprep.subr.mxu0 0.0
    %171 = vmatpush1.msra.mxu0 0.0
    %172 = vmatprep.subr.mxu0 0.0
    %173 = vmatpush1.msra.mxu0 0.0
    %174 = vmatprep.subr.mxu0 0.0
    %175 = vmatpush1.msra.mxu0 0.0
    %176 = vmatprep.subr.mxu0 0.0
    %177 = vmatpush1.msra.mxu0 0.0
    %178 = vmatprep.subr.mxu0 0.0
    %179 = vmatpush1.msra.mxu0 0.0
    %180 = vmatprep.subr.mxu0 0.0
    %181 = vmatpush1.msra.mxu0 0.0
    %182 = vmatprep.subr.mxu0 0.0
    %183 = vmatpush1.msra.mxu0 0.0
    %184 = vmatprep.subr.mxu0 0.0
    %185 = vmatpush1.msra.mxu0 0.0
    %186 = vmatprep.subr.mxu0 0.0
    %187 = vmatpush1.msra.mxu0 0.0
    %188 = vmatprep.subr.mxu0 0.0
    %189 = vmatpush1.msra.mxu0 0.0
    %190 = vmatprep.subr.mxu0 0.0
    %191 = vmatpush1.msra.mxu0 0.0
    %192 = vmatprep.subr.mxu0 0.0
    %193 = vmatpush1.msra.mxu0 0.0
    %194 = vmatprep.subr.mxu0 0.0
    %195 = vmatpush1.msra.mxu0 0.0
    %196 = vmatprep.mubr.f32.mxu0 0.0
    %197 = vmatmul.mubr.f32.gmra.mrb[0].mxu0 %v130
    %v198 = vpop.f32.mrb[0].mxu0
    %v199 = vadd.f32 %v116, %v198
    %v200 = vpop.f32.mrb[0].mxu0
    %v201 = vadd.f32 %v120, %v200
    %202 = vdwg.mxu0
    %203 = vmatprep.subr.mxu0 0.0
    %204 = vmatpush1.msra.mxu0 %v101
    %205 = vmatprep.subr.mxu0 0.0
    %206 = vmatpush1.msra.mxu0 %v104
    %207 = vmatprep.subr.mxu0 0.0
    %208 = vmatpush1.msra.mxu0 %v107
    %209 = vmatprep.subr.mxu0 0.0
    %210 = vmatpush1.msra.mxu0 %v110
    %211 = vmatprep.subr.mxu0 0.0
    %212 = vmatpush1.msra.mxu0 0.0
    %213 = vmatprep.subr.mxu0 0.0
    %214 = vmatpush1.msra.mxu0 0.0
    %215 = vmatprep.subr.mxu0 0.0
    %216 = vmatpush1.msra.mxu0 0.0
    %217 = vmatprep.subr.mxu0 0.0
    %218 = vmatpush1.msra.mxu0 0.0
    %219 = vmatprep.subr.mxu0 0.0
    %220 = vmatpush1.msra.mxu0 0.0
    %221 = vmatprep.subr.mxu0 0.0
    %222 = vmatpush1.msra.mxu0 0.0
    %223 = vmatprep.subr.mxu0 0.0
    %224 = vmatpush1.msra.mxu0 0.0
    %225 = vmatprep.subr.mxu0 0.0
    %226 = vmatpush1.msra.mxu0 0.0
    %227 = vmatprep.subr.mxu0 0.0
    %228 = vmatpush1.msra.mxu0 0.0
    %229 = vmatprep.subr.mxu0 0.0
    %230 = vmatpush1.msra.mxu0 0.0
    %231 = vmatprep.subr.mxu0 0.0
    %232 = vmatpush1.msra.mxu0 0.0
    %233 = vmatprep.subr.mxu0 0.0
    %234 = vmatpush1.msra.mxu0 0.0
    %235 = vmatprep.subr.mxu0 0.0
    %236 = vmatpush1.msra.mxu0 0.0
    %237 = vmatprep.subr.mxu0 0.0
    %238 = vmatpush1.msra.mxu0 0.0
    %239 = vmatprep.subr.mxu0 0.0
    %240 = vmatpush1.msra.mxu0 0.0
    %241 = vmatprep.subr.mxu0 0.0
    %242 = vmatpush1.msra.mxu0 0.0
    %243 = vmatprep.subr.mxu0 0.0
    %244 = vmatpush1.msra.mxu0 0.0
    %245 = vmatprep.subr.mxu0 0.0
    %246 = vmatpush1.msra.mxu0 0.0
    %247 = vmatprep.subr.mxu0 0.0
    %248 = vmatpush1.msra.mxu0 0.0
    %249 = vmatprep.subr.mxu0 0.0
    %250 = vmatpush1.msra.mxu0 0.0
    %251 = vmatprep.subr.mxu0 0.0
    %252 = vmatpush1.msra.mxu0 0.0
    %253 = vmatprep.subr.mxu0 0.0
    %254 = vmatpush1.msra.mxu0 0.0
    %255 = vmatprep.subr.mxu0 0.0
    %256 = vmatpush1.msra.mxu0 0.0
    %257 = vmatprep.subr.mxu0 0.0
    %258 = vmatpush1.msra.mxu0 0.0
    %259 = vmatprep.subr.mxu0 0.0
    %260 = vmatpush1.msra.mxu0 0.0
    %261 = vmatprep.subr.mxu0 0.0
    %262 = vmatpush1.msra.mxu0 0.0
    %263 = vmatprep.subr.mxu0 0.0
    %264 = vmatpush1.msra.mxu0 0.0
    %265 = vmatprep.subr.mxu0 0.0
    %266 = vmatpush1.msra.mxu0 0.0
    %267 = vmatprep.mubr.f32.mxu0 0.0
    %268 = vmatmul.mubr.f32.gmra.mrb[0].mxu0 %v130
    %v269 = vpop.f32.mrb[0].mxu0
    %v270 = vadd.f32 %v124, %v269
    %v271 = vpop.f32.mrb[0].mxu0
    %272 = vdwg.mxu0
    %v273 = vmax.f32 %v199, 0.0
    %v274 = vmax.f32 %v201, 0.0
    %v275 = vmax.f32 %v270, 0.0
    %v276 = vld [vmem:[#allocation6] sm:$0xff]
    %v277 = vld [vmem:[#allocation6 + $0x8] sm:$0xff]
    %v278 = vld [vmem:[#allocation6 + $0x10] sm:$0xff]
    %v279 = vld [vmem:[#allocation6 + $0x18] sm:$0xff]
    %v280 = vld [vmem:[#allocation6 + $0x20] sm:$0xff]
    %v281 = vld [vmem:[#allocation6 + $0x28] sm:$0xff]
    %v282 = vld [vmem:[#allocation6 + $0x30] sm:$0xff]
    %v283 = vld [vmem:[#allocation6 + $0x38] sm:$0xff]
    %v284 = vld [vmem:[#allocation6 + $0x40] sm:$0xff]
    %v285 = vld [vmem:[#allocation6 + $0x48] sm:$0xff]
    %v286 = vld [vmem:[#allocation6 + $0x50] sm:$0xff]
    %v287 = vld [vmem:[#allocation6 + $0x58] sm:$0xff]
    %v288 = vld [vmem:[#allocation6 + $0x60] sm:$0xff]
    %v289 = vld [vmem:[#allocation6 + $0x68] sm:$0xff]
    %v290 = vld [vmem:[#allocation6 + $0x70] sm:$0xff]
    %v291 = vld [vmem:[#allocation6 + $0x78] sm:$0xff]
    %v292 = vld [vmem:[#allocation6 + $0x80] sm:$0xff]
    %v293 = vld [vmem:[#allocation6 + $0x88] sm:$0xff]
    %v294 = vld [vmem:[#allocation6 + $0x90] sm:$0xff]
    %v295 = vld [vmem:[#allocation6 + $0x98] sm:$0xff]
    %v296 = vld [vmem:[#allocation6 + $0xa0] sm:$0xff]
    %v297 = vld [vmem:[#allocation6 + $0xa8] sm:$0xff]
    %v298 = vld [vmem:[#allocation6 + $0xb0] sm:$0xff]
    %v299 = vld [vmem:[#allocation6 + $0xb8] sm:$0xff]
    %v300 = vld [vmem:[#allocation6 + $0xc0] sm:$0xff]
    %v301 = vld [vmem:[#allocation6 + $0xc8] sm:$0xff]
    %v302 = vld [vmem:[#allocation6 + $0xd0] sm:$0xff]
    %v303 = vld [vmem:[#allocation6 + $0xd8] sm:$0xff]
    %v304 = vld [vmem:[#allocation6 + $0xe0] sm:$0xff]
    %v305 = vld [vmem:[#allocation6 + $0xe8] sm:$0xff]
    %v306 = vld [vmem:[#allocation6 + $0xf0] sm:$0xff]
    %v307 = vld [vmem:[#allocation6 + $0xf8] sm:$0xff]
    %v308 = vld [vmem:[#allocation6 + $0x100] sm:$0xff]
    %v309 = vld [vmem:[#allocation6 + $0x108] sm:$0xff]
    %v310 = vld [vmem:[#allocation6 + $0x110] sm:$0xff]
    %v311 = vld [vmem:[#allocation6 + $0x118] sm:$0xff]
    %v312 = vld [vmem:[#allocation6 + $0x120] sm:$0xff]
    %v313 = vld [vmem:[#allocation6 + $0x128] sm:$0xff]
    %v314 = vld [vmem:[#allocation6 + $0x130] sm:$0xff]
    %v315 = vld [vmem:[#allocation6 + $0x138] sm:$0xff]
    %v316 = vld [vmem:[#allocation6 + $0x140] sm:$0xff]
    %v317 = vld [vmem:[#allocation6 + $0x148] sm:$0xff]
    %v318 = vld [vmem:[#allocation6 + $0x150] sm:$0xff]
    %v319 = vld [vmem:[#allocation6 + $0x158] sm:$0xff]
    %v320 = vld [vmem:[#allocation6 + $0x160] sm:$0xff]
    %v321 = vld [vmem:[#allocation6 + $0x168] sm:$0xff]
    %v322 = vld [vmem:[#allocation6 + $0x170] sm:$0xff]
    %v323 = vld [vmem:[#allocation6 + $0x178] sm:$0xff]
    %v324 = vld [vmem:[#allocation6 + $0x180] sm:$0xff]
    %v325 = vld [vmem:[#allocation6 + $0x188] sm:$0xff]
    %v326 = vld [vmem:[#allocation6 + $0x190] sm:$0xff]
    %v327 = vld [vmem:[#allocation6 + $0x198] sm:$0xff]
    %v328 = vld [vmem:[#allocation6 + $0x1a0] sm:$0xff]
    %v329 = vld [vmem:[#allocation6 + $0x1a8] sm:$0xff]
    %v330 = vld [vmem:[#allocation6 + $0x1b0] sm:$0xff]
    %v331 = vld [vmem:[#allocation6 + $0x1b8] sm:$0xff]
    %v332 = vld [vmem:[#allocation6 + $0x1c0] sm:$0xff]
    %v333 = vld [vmem:[#allocation6 + $0x1c8] sm:$0xff]
    %v334 = vld [vmem:[#allocation6 + $0x1d0] sm:$0xff]
    %v335 = vld [vmem:[#allocation6 + $0x1d8] sm:$0xff]
    %v336 = vld [vmem:[#allocation6 + $0x1e0] sm:$0xff]
    %v337 = vld [vmem:[#allocation6 + $0x1e8] sm:$0xff]
    %v338 = vld [vmem:[#allocation6 + $0x1f0] sm:$0xff]
    %v339 = vld [vmem:[#allocation6 + $0x1f8] sm:$0xff]
    %v340 = vld [vmem:[#allocation6 + $0x200] sm:$0xff]
    %v341 = vld [vmem:[#allocation6 + $0x208] sm:$0xff]
    %v342 = vld [vmem:[#allocation6 + $0x210] sm:$0xff]
    %v343 = vld [vmem:[#allocation6 + $0x218] sm:$0xff]
    %v344 = vld [vmem:[#allocation6 + $0x220] sm:$0xff]
    %v345 = vld [vmem:[#allocation6 + $0x228] sm:$0xff]
    %v346 = vld [vmem:[#allocation6 + $0x230] sm:$0xff]
    %v347 = vld [vmem:[#allocation6 + $0x238] sm:$0xff]
    %v348 = vld [vmem:[#allocation6 + $0x240] sm:$0xff]
    %v349 = vld [vmem:[#allocation6 + $0x248] sm:$0xff]
    %v350 = vld [vmem:[#allocation6 + $0x250] sm:$0xff]
    %v351 = vld [vmem:[#allocation6 + $0x258] sm:$0xff]
    %v352 = vld [vmem:[#allocation6 + $0x260] sm:$0xff]
    %v353 = vld [vmem:[#allocation6 + $0x268] sm:$0xff]
    %v354 = vld [vmem:[#allocation6 + $0x270] sm:$0xff]
    %v355 = vld [vmem:[#allocation6 + $0x278] sm:$0xff]
    %v356 = vld [vmem:[#allocation6 + $0x280] sm:$0xff]
    %v357 = vld [vmem:[#allocation6 + $0x288] sm:$0xff]
    %v358 = vld [vmem:[#allocation6 + $0x290] sm:$0xff]
    %v359 = vld [vmem:[#allocation6 + $0x298] sm:$0xff]
    %v360 = vld [vmem:[#allocation6 + $0x2a0] sm:$0xff]
    %v361 = vld [vmem:[#allocation6 + $0x2a8] sm:$0xff]
    %v362 = vld [vmem:[#allocation6 + $0x2b0] sm:$0xff]
    %v363 = vld [vmem:[#allocation6 + $0x2b8] sm:$0xff]
    %v364 = vld [vmem:[#allocation6 + $0x2c0] sm:$0xff]
    %v365 = vld [vmem:[#allocation6 + $0x2c8] sm:$0xff]
    %v366 = vld [vmem:[#allocation6 + $0x2d0] sm:$0xff]
    %v367 = vld [vmem:[#allocation6 + $0x2d8] sm:$0xff]
    %v368 = vld [vmem:[#allocation6 + $0x2e0] sm:$0xff]
    %v369 = vld [vmem:[#allocation6 + $0x2e8] sm:$0xff]
    %v370 = vld [vmem:[#allocation6 + $0x2f0] sm:$0xff]
    %v371 = vld [vmem:[#allocation6 + $0x2f8] sm:$0xff]
    %v372 = vld [vmem:[#allocation6 + $0x300] sm:$0xff]
    %v373 = vld [vmem:[#allocation6 + $0x308] sm:$0xff]
    %v374 = vld [vmem:[#allocation6 + $0x310] sm:$0xff]
    %v375 = vld [vmem:[#allocation6 + $0x318] sm:$0xff]
    %v376 = vld [vmem:[#allocation6 + $0x320] sm:$0xff]
    %v377 = vld [vmem:[#allocation6 + $0x328] sm:$0xff]
    %v378 = vld [vmem:[#allocation6 + $0x330] sm:$0xff]
    %v379 = vld [vmem:[#allocation6 + $0x338] sm:$0xff]
    %v380 = vld [vmem:[#allocation6 + $0x340] sm:$0xff]
    %v381 = vld [vmem:[#allocation6 + $0x348] sm:$0xff]
    %v382 = vld [vmem:[#allocation6 + $0x350] sm:$0xff]
    %v383 = vld [vmem:[#allocation6 + $0x358] sm:$0xff]
    %v384 = vld [vmem:[#allocation6 + $0x360] sm:$0xff]
    %v385 = vld [vmem:[#allocation6 + $0x368] sm:$0xff]
    %v386 = vld [vmem:[#allocation6 + $0x370] sm:$0xff]
    %v387 = vld [vmem:[#allocation6 + $0x378] sm:$0xff]
    %v388 = vld [vmem:[#allocation6 + $0x380] sm:$0xff]
    %v389 = vld [vmem:[#allocation6 + $0x388] sm:$0xff]
    %v390 = vld [vmem:[#allocation6 + $0x390] sm:$0xff]
    %v391 = vld [vmem:[#allocation6 + $0x398] sm:$0xff]
    %v392 = vld [vmem:[#allocation6 + $0x3a0] sm:$0xff]
    %v393 = vld [vmem:[#allocation6 + $0x3a8] sm:$0xff]
    %v394 = vld [vmem:[#allocation6 + $0x3b0] sm:$0xff]
    %v395 = vld [vmem:[#allocation6 + $0x3b8] sm:$0xff]
    %v396 = vld [vmem:[#allocation6 + $0x3c0] sm:$0xff]
    %v397 = vld [vmem:[#allocation6 + $0x3c8] sm:$0xff]
    %v398 = vld [vmem:[#allocation6 + $0x3d0] sm:$0xff]
    %v399 = vld [vmem:[#allocation6 + $0x3d8] sm:$0xff]
    %v400 = vld [vmem:[#allocation6 + $0x3e0] sm:$0xff]
    %v401 = vld [vmem:[#allocation6 + $0x3e8] sm:$0xff]
    %v402 = vld [vmem:[#allocation6 + $0x3f0] sm:$0xff]
    %v403 = vld [vmem:[#allocation6 + $0x3f8] sm:$0xff]
    %v404 = vld [vmem:[#allocation6 + $0x400] sm:$0xff]
    %v405 = vld [vmem:[#allocation6 + $0x408] sm:$0xff]
    %v406 = vld [vmem:[#allocation6 + $0x410] sm:$0xff]
    %v407 = vld [vmem:[#allocation6 + $0x418] sm:$0xff]
    %v408 = vld [vmem:[#allocation6 + $0x420] sm:$0xff]
    %v409 = vld [vmem:[#allocation6 + $0x428] sm:$0xff]
    %v410 = vld [vmem:[#allocation6 + $0x430] sm:$0xff]
    %v411 = vld [vmem:[#allocation6 + $0x438] sm:$0xff]
    %v412 = vld [vmem:[#allocation6 + $0x440] sm:$0xff]
    %v413 = vld [vmem:[#allocation6 + $0x448] sm:$0xff]
    %v414 = vld [vmem:[#allocation6 + $0x450] sm:$0xff]
    %v415 = vld [vmem:[#allocation6 + $0x458] sm:$0xff]
    %v416 = vld [vmem:[#allocation6 + $0x460] sm:$0xff]
    %v417 = vld [vmem:[#allocation6 + $0x468] sm:$0xff]
    %v418 = vld [vmem:[#allocation6 + $0x470] sm:$0xff]
    %v419 = vld [vmem:[#allocation6 + $0x478] sm:$0xff]
    %v420 = vld [vmem:[%s4] sm:$0x7]
    %v422 = vlaneseq
    %v423 = vshrl.u32 %v422, 7
    %v424 = vsub.s32 0, %v423
    %v425 = vrot.slane %v420, %v424
    %v426 = vlaneseq
    %v427 = vshrl.u32 %v426, 7
    %v428 = vsub.s32 1, %v427
    %v429 = vrot.slane %v420, %v428
    %v430 = vlaneseq
    %v431 = vshrl.u32 %v430, 7
    %v432 = vsub.s32 2, %v431
    %v433 = vrot.slane %v420, %v432
    %437 = vmatprep.subr.mxu0 %v277
    %438 = vmatpush1.msra.mxu0 %v276
    %439 = vmatprep.subr.mxu0 %v280
    %440 = vmatpush1.msra.mxu0 %v279
    %441 = vmatprep.subr.mxu0 %v283
    %442 = vmatpush1.msra.mxu0 %v282
    %443 = vmatprep.subr.mxu0 %v286
    %444 = vmatpush1.msra.mxu0 %v285
    %445 = vmatprep.subr.mxu0 %v289
    %446 = vmatpush1.msra.mxu0 %v288
    %447 = vmatprep.subr.mxu0 %v292
    %448 = vmatpush1.msra.mxu0 %v291
    %449 = vmatprep.subr.mxu0 %v295
    %450 = vmatpush1.msra.mxu0 %v294
    %451 = vmatprep.subr.mxu0 %v298
    %452 = vmatpush1.msra.mxu0 %v297
    %453 = vmatprep.subr.mxu0 %v301
    %454 = vmatpush1.msra.mxu0 %v300
    %455 = vmatprep.subr.mxu0 %v304
    %456 = vmatpush1.msra.mxu0 %v303
    %457 = vmatprep.subr.mxu0 %v307
    %458 = vmatpush1.msra.mxu0 %v306
    %459 = vmatprep.subr.mxu0 %v310
    %460 = vmatpush1.msra.mxu0 %v309
    %461 = vmatprep.subr.mxu0 %v313
    %462 = vmatpush1.msra.mxu0 %v312
    %463 = vmatprep.subr.mxu0 %v316
    %464 = vmatpush1.msra.mxu0 %v315
    %465 = vmatprep.subr.mxu0 %v319
    %466 = vmatpush1.msra.mxu0 %v318
    %467 = vmatprep.subr.mxu0 %v322
    %468 = vmatpush1.msra.mxu0 %v321
    %469 = vmatprep.subr.mxu0 %v325
    %470 = vmatpush1.msra.mxu0 %v324
    %471 = vmatprep.subr.mxu0 %v328
    %472 = vmatpush1.msra.mxu0 %v327
    %473 = vmatprep.subr.mxu0 %v331
    %474 = vmatpush1.msra.mxu0 %v330
    %475 = vmatprep.subr.mxu0 %v334
    %476 = vmatpush1.msra.mxu0 %v333
    %477 = vmatprep.subr.mxu0 %v337
    %478 = vmatpush1.msra.mxu0 %v336
    %479 = vmatprep.subr.mxu0 %v340
    %480 = vmatpush1.msra.mxu0 %v339
    %481 = vmatprep.subr.mxu0 %v343
    %482 = vmatpush1.msra.mxu0 %v342
    %483 = vmatprep.subr.mxu0 %v346
    %484 = vmatpush1.msra.mxu0 %v345
    %485 = vmatprep.subr.mxu0 %v349
    %486 = vmatpush1.msra.mxu0 %v348
    %487 = vmatprep.subr.mxu0 %v352
    %488 = vmatpush1.msra.mxu0 %v351
    %489 = vmatprep.subr.mxu0 %v355
    %490 = vmatpush1.msra.mxu0 %v354
    %491 = vmatprep.subr.mxu0 %v358
    %492 = vmatpush1.msra.mxu0 %v357
    %493 = vmatprep.subr.mxu0 %v361
    %494 = vmatpush1.msra.mxu0 %v360
    %495 = vmatprep.subr.mxu0 %v364
    %496 = vmatpush1.msra.mxu0 %v363
    %497 = vmatprep.subr.mxu0 %v367
    %498 = vmatpush1.msra.mxu0 %v366
    %499 = vmatprep.subr.mxu0 %v370
    %500 = vmatpush1.msra.mxu0 %v369
    %501 = vmatprep.mubr.f32.mxu0 %v274
    %502 = vmatmul.mubr.f32.gmra.mrb[0].mxu0 %v273
    %v503 = vpop.f32.mrb[0].mxu0
    %v504 = vadd.f32 %v425, %v503
    %v505 = vpop.f32.mrb[0].mxu0
    %v506 = vadd.f32 %v429, %v505
    %507 = vdwg.mxu0
    %508 = vmatprep.subr.mxu0 %v373
    %509 = vmatpush1.msra.mxu0 %v372
    %510 = vmatprep.subr.mxu0 %v376
    %511 = vmatpush1.msra.mxu0 %v375
    %512 = vmatprep.subr.mxu0 %v379
    %513 = vmatpush1.msra.mxu0 %v378
    %514 = vmatprep.subr.mxu0 %v382
    %515 = vmatpush1.msra.mxu0 %v381
    %516 = vmatprep.subr.mxu0 %v385
    %517 = vmatpush1.msra.mxu0 %v384
    %518 = vmatprep.subr.mxu0 %v388
    %519 = vmatpush1.msra.mxu0 %v387
    %520 = vmatprep.subr.mxu0 %v391
    %521 = vmatpush1.msra.mxu0 %v390
    %522 = vmatprep.subr.mxu0 %v394
    %523 = vmatpush1.msra.mxu0 %v393
    %524 = vmatprep.subr.mxu0 %v397
    %525 = vmatpush1.msra.mxu0 %v396
    %526 = vmatprep.subr.mxu0 %v400
    %527 = vmatpush1.msra.mxu0 %v399
    %528 = vmatprep.subr.mxu0 %v403
    %529 = vmatpush1.msra.mxu0 %v402
    %530 = vmatprep.subr.mxu0 %v406
    %531 = vmatpush1.msra.mxu0 %v405
    %532 = vmatprep.subr.mxu0 %v409
    %533 = vmatpush1.msra.mxu0 %v408
    %534 = vmatprep.subr.mxu0 %v412
    %535 = vmatpush1.msra.mxu0 %v411
    %536 = vmatprep.subr.mxu0 %v415
    %537 = vmatpush1.msra.mxu0 %v414
    %538 = vmatprep.subr.mxu0 %v418
    %539 = vmatpush1.msra.mxu0 %v417
    %540 = vmatprep.subr.mxu0 0.0
    %541 = vmatpush1.msra.mxu0 0.0
    %542 = vmatprep.subr.mxu0 0.0
    %543 = vmatpush1.msra.mxu0 0.0
    %544 = vmatprep.subr.mxu0 0.0
    %545 = vmatpush1.msra.mxu0 0.0
    %546 = vmatprep.subr.mxu0 0.0
    %547 = vmatpush1.msra.mxu0 0.0
    %548 = vmatprep.subr.mxu0 0.0
    %549 = vmatpush1.msra.mxu0 0.0
    %550 = vmatprep.subr.mxu0 0.0
    %551 = vmatpush1.msra.mxu0 0.0
    %552 = vmatprep.subr.mxu0 0.0
    %553 = vmatpush1.msra.mxu0 0.0
    %554 = vmatprep.subr.mxu0 0.0
    %555 = vmatpush1.msra.mxu0 0.0
    %556 = vmatprep.subr.mxu0 0.0
    %557 = vmatpush1.msra.mxu0 0.0
    %558 = vmatprep.subr.mxu0 0.0
    %559 = vmatpush1.msra.mxu0 0.0
    %560 = vmatprep.subr.mxu0 0.0
    %561 = vmatpush1.msra.mxu0 0.0
    %562 = vmatprep.subr.mxu0 0.0
    %563 = vmatpush1.msra.mxu0 0.0
    %564 = vmatprep.subr.mxu0 0.0
    %565 = vmatpush1.msra.mxu0 0.0
    %566 = vmatprep.subr.mxu0 0.0
    %567 = vmatpush1.msra.mxu0 0.0
    %568 = vmatprep.subr.mxu0 0.0
    %569 = vmatpush1.msra.mxu0 0.0
    %570 = vmatprep.subr.mxu0 0.0
    %571 = vmatpush1.msra.mxu0 0.0
    %572 = vmatprep.mubr.f32.mxu0 0.0
    %573 = vmatmul.mubr.f32.gmra.mrb[0].mxu0 %v275
    %v574 = vpop.f32.mrb[0].mxu0
    %v575 = vadd.f32 %v504, %v574
    %v576 = vpop.f32.mrb[0].mxu0
    %v577 = vadd.f32 %v506, %v576
    %578 = vdwg.mxu0
    %579 = vmatprep.subr.mxu0 0.0
    %580 = vmatpush1.msra.mxu0 %v278
    %581 = vmatprep.subr.mxu0 0.0
    %582 = vmatpush1.msra.mxu0 %v281
    %583 = vmatprep.subr.mxu0 0.0
    %584 = vmatpush1.msra.mxu0 %v284
    %585 = vmatprep.subr.mxu0 0.0
    %586 = vmatpush1.msra.mxu0 %v287
    %587 = vmatprep.subr.mxu0 0.0
    %588 = vmatpush1.msra.mxu0 %v290
    %589 = vmatprep.subr.mxu0 0.0
    %590 = vmatpush1.msra.mxu0 %v293
    %591 = vmatprep.subr.mxu0 0.0
    %592 = vmatpush1.msra.mxu0 %v296
    %593 = vmatprep.subr.mxu0 0.0
    %594 = vmatpush1.msra.mxu0 %v299
    %595 = vmatprep.subr.mxu0 0.0
    %596 = vmatpush1.msra.mxu0 %v302
    %597 = vmatprep.subr.mxu0 0.0
    %598 = vmatpush1.msra.mxu0 %v305
    %599 = vmatprep.subr.mxu0 0.0
    %600 = vmatpush1.msra.mxu0 %v308
    %601 = vmatprep.subr.mxu0 0.0
    %602 = vmatpush1.msra.mxu0 %v311
    %603 = vmatprep.subr.mxu0 0.0
    %604 = vmatpush1.msra.mxu0 %v314
    %605 = vmatprep.subr.mxu0 0.0
    %606 = vmatpush1.msra.mxu0 %v317
    %607 = vmatprep.subr.mxu0 0.0
    %608 = vmatpush1.msra.mxu0 %v320
    %609 = vmatprep.subr.mxu0 0.0
    %610 = vmatpush1.msra.mxu0 %v323
    %611 = vmatprep.subr.mxu0 0.0
    %612 = vmatpush1.msra.mxu0 %v326
    %613 = vmatprep.subr.mxu0 0.0
    %614 = vmatpush1.msra.mxu0 %v329
    %615 = vmatprep.subr.mxu0 0.0
    %616 = vmatpush1.msra.mxu0 %v332
    %617 = vmatprep.subr.mxu0 0.0
    %618 = vmatpush1.msra.mxu0 %v335
    %619 = vmatprep.subr.mxu0 0.0
    %620 = vmatpush1.msra.mxu0 %v338
    %621 = vmatprep.subr.mxu0 0.0
    %622 = vmatpush1.msra.mxu0 %v341
    %623 = vmatprep.subr.mxu0 0.0
    %624 = vmatpush1.msra.mxu0 %v344
    %625 = vmatprep.subr.mxu0 0.0
    %626 = vmatpush1.msra.mxu0 %v347
    %627 = vmatprep.subr.mxu0 0.0
    %628 = vmatpush1.msra.mxu0 %v350
    %629 = vmatprep.subr.mxu0 0.0
    %630 = vmatpush1.msra.mxu0 %v353
    %631 = vmatprep.subr.mxu0 0.0
    %632 = vmatpush1.msra.mxu0 %v356
    %633 = vmatprep.subr.mxu0 0.0
    %634 = vmatpush1.msra.mxu0 %v359
    %635 = vmatprep.subr.mxu0 0.0
    %636 = vmatpush1.msra.mxu0 %v362
    %637 = vmatprep.subr.mxu0 0.0
    %638 = vmatpush1.msra.mxu0 %v365
    %639 = vmatprep.subr.mxu0 0.0
    %640 = vmatpush1.msra.mxu0 %v368
    %641 = vmatprep.subr.mxu0 0.0
    %642 = vmatpush1.msra.mxu0 %v371
    %643 = vmatprep.mubr.f32.mxu0 %v274
    %644 = vmatmul.mubr.f32.gmra.mrb[0].mxu0 %v273
    %v645 = vpop.f32.mrb[0].mxu0
    %v646 = vadd.f32 %v433, %v645
    %v647 = vpop.f32.mrb[0].mxu0
    %648 = vdwg.mxu0
    %649 = vmatprep.subr.mxu0 0.0
    %650 = vmatpush1.msra.mxu0 %v374
    %651 = vmatprep.subr.mxu0 0.0
    %652 = vmatpush1.msra.mxu0 %v377
    %653 = vmatprep.subr.mxu0 0.0
    %654 = vmatpush1.msra.mxu0 %v380
    %655 = vmatprep.subr.mxu0 0.0
    %656 = vmatpush1.msra.mxu0 %v383
    %657 = vmatprep.subr.mxu0 0.0
    %658 = vmatpush1.msra.mxu0 %v386
    %659 = vmatprep.subr.mxu0 0.0
    %660 = vmatpush1.msra.mxu0 %v389
    %661 = vmatprep.subr.mxu0 0.0
    %662 = vmatpush1.msra.mxu0 %v392
    %663 = vmatprep.subr.mxu0 0.0
    %664 = vmatpush1.msra.mxu0 %v395
    %665 = vmatprep.subr.mxu0 0.0
    %666 = vmatpush1.msra.mxu0 %v398
    %667 = vmatprep.subr.mxu0 0.0
    %668 = vmatpush1.msra.mxu0 %v401
    %669 = vmatprep.subr.mxu0 0.0
    %670 = vmatpush1.msra.mxu0 %v404
    %671 = vmatprep.subr.mxu0 0.0
    %672 = vmatpush1.msra.mxu0 %v407
    %673 = vmatprep.subr.mxu0 0.0
    %674 = vmatpush1.msra.mxu0 %v410
    %675 = vmatprep.subr.mxu0 0.0
    %676 = vmatpush1.msra.mxu0 %v413
    %677 = vmatprep.subr.mxu0 0.0
    %678 = vmatpush1.msra.mxu0 %v416
    %679 = vmatprep.subr.mxu0 0.0
    %680 = vmatpush1.msra.mxu0 %v419
    %681 = vmatprep.subr.mxu0 0.0
    %682 = vmatpush1.msra.mxu0 0.0
    %683 = vmatprep.subr.mxu0 0.0
    %684 = vmatpush1.msra.mxu0 0.0
    %685 = vmatprep.subr.mxu0 0.0
    %686 = vmatpush1.msra.mxu0 0.0
    %687 = vmatprep.subr.mxu0 0.0
    %688 = vmatpush1.msra.mxu0 0.0
    %689 = vmatprep.subr.mxu0 0.0
    %690 = vmatpush1.msra.mxu0 0.0
    %691 = vmatprep.subr.mxu0 0.0
    %692 = vmatpush1.msra.mxu0 0.0
    %693 = vmatprep.subr.mxu0 0.0
    %694 = vmatpush1.msra.mxu0 0.0
    %695 = vmatprep.subr.mxu0 0.0
    %696 = vmatpush1.msra.mxu0 0.0
    %697 = vmatprep.subr.mxu0 0.0
    %698 = vmatpush1.msra.mxu0 0.0
    %699 = vmatprep.subr.mxu0 0.0
    %700 = vmatpush1.msra.mxu0 0.0
    %701 = vmatprep.subr.mxu0 0.0
    %702 = vmatpush1.msra.mxu0 0.0
    %703 = vmatprep.subr.mxu0 0.0
    %704 = vmatpush1.msra.mxu0 0.0
    %705 = vmatprep.subr.mxu0 0.0
    %706 = vmatpush1.msra.mxu0 0.0
    %707 = vmatprep.subr.mxu0 0.0
    %708 = vmatpush1.msra.mxu0 0.0
    %709 = vmatprep.subr.mxu0 0.0
    %710 = vmatpush1.msra.mxu0 0.0
    %711 = vmatprep.subr.mxu0 0.0
    %712 = vmatpush1.msra.mxu0 0.0
    %713 = vmatprep.mubr.f32.mxu0 0.0
    %714 = vmatmul.mubr.f32.gmra.mrb[0].mxu0 %v275
    %v715 = vpop.f32.mrb[0].mxu0
    %v716 = vadd.f32 %v646, %v715
    %v717 = vpop.f32.mrb[0].mxu0
    %718 = vdwg.mxu0
    %v719 = vmax.f32 %v575, 0.0
    %v720 = vmax.f32 %v577, 0.0
    %v721 = vmax.f32 %v716, 0.0
    %v722 = vld [vmem:[#allocation7] sm:$0xff]
    %v723 = vld [vmem:[#allocation7 + $0x8] sm:$0xff]
    %v724 = vld [vmem:[#allocation7 + $0x10] sm:$0xff]
    %v725 = vld [vmem:[#allocation7 + $0x18] sm:$0xff]
    %v726 = vld [vmem:[#allocation7 + $0x20] sm:$0xff]
    %v727 = vld [vmem:[#allocation7 + $0x28] sm:$0xff]
    %v728 = vld [vmem:[#allocation7 + $0x30] sm:$0xff]
    %v729 = vld [vmem:[#allocation7 + $0x38] sm:$0xff]
    %v730 = vld [vmem:[#allocation7 + $0x40] sm:$0xff]
    %v731 = vld [vmem:[#allocation7 + $0x48] sm:$0xff]
    %v732 = vld [vmem:[#allocation7 + $0x50] sm:$0xff]
    %v733 = vld [vmem:[#allocation7 + $0x58] sm:$0xff]
    %v734 = vld [vmem:[#allocation7 + $0x60] sm:$0xff]
    %v735 = vld [vmem:[#allocation7 + $0x68] sm:$0xff]
    %v736 = vld [vmem:[#allocation7 + $0x70] sm:$0xff]
    %v737 = vld [vmem:[#allocation7 + $0x78] sm:$0xff]
    %v738 = vld [vmem:[#allocation7 + $0x80] sm:$0xff]
    %v739 = vld [vmem:[#allocation7 + $0x88] sm:$0xff]
    %v740 = vld [vmem:[#allocation7 + $0x90] sm:$0xff]
    %v741 = vld [vmem:[#allocation7 + $0x98] sm:$0xff]
    %v742 = vld [vmem:[#allocation7 + $0xa0] sm:$0xff]
    %v743 = vld [vmem:[#allocation7 + $0xa8] sm:$0xff]
    %v744 = vld [vmem:[#allocation7 + $0xb0] sm:$0xff]
    %v745 = vld [vmem:[#allocation7 + $0xb8] sm:$0xff]
    %v746 = vld [vmem:[#allocation7 + $0xc0] sm:$0xff]
    %v747 = vld [vmem:[#allocation7 + $0xc8] sm:$0xff]
    %v748 = vld [vmem:[#allocation7 + $0xd0] sm:$0xff]
    %v749 = vld [vmem:[#allocation7 + $0xd8] sm:$0xff]
    %v750 = vld [vmem:[#allocation7 + $0xe0] sm:$0xff]
    %v751 = vld [vmem:[#allocation7 + $0xe8] sm:$0xff]
    %v752 = vld [vmem:[#allocation7 + $0xf0] sm:$0xff]
    %v753 = vld [vmem:[#allocation7 + $0xf8] sm:$0xff]
    %v754 = vld [vmem:[#allocation7 + $0x100] sm:$0xff]
    %v755 = vld [vmem:[#allocation7 + $0x108] sm:$0xff]
    %v756 = vld [vmem:[#allocation7 + $0x110] sm:$0xff]
    %v757 = vld [vmem:[#allocation7 + $0x118] sm:$0xff]
    %v758 = vld [vmem:[#allocation7 + $0x120] sm:$0xff]
    %v759 = vld [vmem:[#allocation7 + $0x128] sm:$0xff]
    %v760 = vld [vmem:[#allocation7 + $0x130] sm:$0xff]
    %v761 = vld [vmem:[#allocation7 + $0x138] sm:$0xff]
    %v762 = vld [vmem:[#allocation7 + $0x140] sm:$0xff]
    %v763 = vld [vmem:[#allocation7 + $0x148] sm:$0xff]
    %v764 = vld [vmem:[#allocation7 + $0x150] sm:$0xff]
    %v765 = vld [vmem:[#allocation7 + $0x158] sm:$0xff]
    %v766 = vld [vmem:[#allocation7 + $0x160] sm:$0xff]
    %v767 = vld [vmem:[#allocation7 + $0x168] sm:$0xff]
    %v768 = vld [vmem:[#allocation7 + $0x170] sm:$0xff]
    %v769 = vld [vmem:[#allocation7 + $0x178] sm:$0xff]
    %v770 = vld [vmem:[#allocation7 + $0x180] sm:$0xff]
    %v771 = vld [vmem:[#allocation7 + $0x188] sm:$0xff]
    %v772 = vld [vmem:[#allocation7 + $0x190] sm:$0xff]
    %v773 = vld [vmem:[#allocation7 + $0x198] sm:$0xff]
    %v774 = vld [vmem:[#allocation7 + $0x1a0] sm:$0xff]
    %v775 = vld [vmem:[#allocation7 + $0x1a8] sm:$0xff]
    %v776 = vld [vmem:[#allocation7 + $0x1b0] sm:$0xff]
    %v777 = vld [vmem:[#allocation7 + $0x1b8] sm:$0xff]
    %v778 = vld [vmem:[#allocation7 + $0x1c0] sm:$0xff]
    %v779 = vld [vmem:[#allocation7 + $0x1c8] sm:$0xff]
    %v780 = vld [vmem:[#allocation7 + $0x1d0] sm:$0xff]
    %v781 = vld [vmem:[#allocation7 + $0x1d8] sm:$0xff]
    %v782 = vld [vmem:[#allocation7 + $0x1e0] sm:$0xff]
    %v783 = vld [vmem:[#allocation7 + $0x1e8] sm:$0xff]
    %v784 = vld [vmem:[#allocation7 + $0x1f0] sm:$0xff]
    %v785 = vld [vmem:[#allocation7 + $0x1f8] sm:$0xff]
    %v786 = vld [vmem:[#allocation7 + $0x200] sm:$0xff]
    %v787 = vld [vmem:[#allocation7 + $0x208] sm:$0xff]
    %v788 = vld [vmem:[#allocation7 + $0x210] sm:$0xff]
    %v789 = vld [vmem:[#allocation7 + $0x218] sm:$0xff]
    %v790 = vld [vmem:[#allocation7 + $0x220] sm:$0xff]
    %v791 = vld [vmem:[#allocation7 + $0x228] sm:$0xff]
    %v792 = vld [vmem:[#allocation7 + $0x230] sm:$0xff]
    %v793 = vld [vmem:[#allocation7 + $0x238] sm:$0xff]
    %v794 = vld [vmem:[#allocation7 + $0x240] sm:$0xff]
    %v795 = vld [vmem:[#allocation7 + $0x248] sm:$0xff]
    %v796 = vld [vmem:[#allocation7 + $0x250] sm:$0xff]
    %v797 = vld [vmem:[#allocation7 + $0x258] sm:$0xff]
    %v798 = vld [vmem:[#allocation7 + $0x260] sm:$0xff]
    %v799 = vld [vmem:[#allocation7 + $0x268] sm:$0xff]
    %v800 = vld [vmem:[#allocation7 + $0x270] sm:$0xff]
    %v801 = vld [vmem:[#allocation7 + $0x278] sm:$0xff]
    %v802 = vld [vmem:[#allocation7 + $0x280] sm:$0xff]
    %v803 = vld [vmem:[#allocation7 + $0x288] sm:$0xff]
    %v804 = vld [vmem:[#allocation7 + $0x290] sm:$0xff]
    %v805 = vld [vmem:[#allocation7 + $0x298] sm:$0xff]
    %v806 = vld [vmem:[#allocation7 + $0x2a0] sm:$0xff]
    %v807 = vld [vmem:[#allocation7 + $0x2a8] sm:$0xff]
    %v808 = vld [vmem:[#allocation7 + $0x2b0] sm:$0xff]
    %v809 = vld [vmem:[#allocation7 + $0x2b8] sm:$0xff]
    %v810 = vld [vmem:[#allocation7 + $0x2c0] sm:$0xff]
    %v811 = vld [vmem:[#allocation7 + $0x2c8] sm:$0xff]
    %v812 = vld [vmem:[#allocation7 + $0x2d0] sm:$0xff]
    %v813 = vld [vmem:[#allocation7 + $0x2d8] sm:$0xff]
    %v814 = vld [vmem:[#allocation7 + $0x2e0] sm:$0xff]
    %v815 = vld [vmem:[#allocation7 + $0x2e8] sm:$0xff]
    %v816 = vld [vmem:[#allocation7 + $0x2f0] sm:$0xff]
    %v817 = vld [vmem:[#allocation7 + $0x2f8] sm:$0xff]
    %v818 = vld [vmem:[#allocation7 + $0x300] sm:$0xff]
    %v819 = vld [vmem:[#allocation7 + $0x308] sm:$0xff]
    %v820 = vld [vmem:[#allocation7 + $0x310] sm:$0xff]
    %v821 = vld [vmem:[#allocation7 + $0x318] sm:$0xff]
    %v822 = vld [vmem:[#allocation7 + $0x320] sm:$0xff]
    %v823 = vld [vmem:[#allocation7 + $0x328] sm:$0xff]
    %v824 = vld [vmem:[#allocation7 + $0x330] sm:$0xff]
    %v825 = vld [vmem:[#allocation7 + $0x338] sm:$0xff]
    %v826 = vld [vmem:[#allocation7 + $0x340] sm:$0xff]
    %v827 = vld [vmem:[#allocation7 + $0x348] sm:$0xff]
    %v828 = vld [vmem:[#allocation7 + $0x350] sm:$0xff]
    %v829 = vld [vmem:[#allocation7 + $0x358] sm:$0xff]
    %v830 = vld [vmem:[#allocation7 + $0x360] sm:$0xff]
    %v831 = vld [vmem:[#allocation7 + $0x368] sm:$0xff]
    %v832 = vld [vmem:[#allocation7 + $0x370] sm:$0xff]
    %v833 = vld [vmem:[#allocation7 + $0x378] sm:$0xff]
    %v834 = vld [vmem:[#allocation7 + $0x380] sm:$0xff]
    %v835 = vld [vmem:[#allocation7 + $0x388] sm:$0xff]
    %v836 = vld [vmem:[#allocation7 + $0x390] sm:$0xff]
    %v837 = vld [vmem:[#allocation7 + $0x398] sm:$0xff]
    %v838 = vld [vmem:[#allocation7 + $0x3a0] sm:$0xff]
    %v839 = vld [vmem:[#allocation7 + $0x3a8] sm:$0xff]
    %v840 = vld [vmem:[#allocation7 + $0x3b0] sm:$0xff]
    %v841 = vld [vmem:[#allocation7 + $0x3b8] sm:$0xff]
    %v842 = vld [vmem:[#allocation7 + $0x3c0] sm:$0xff]
    %v843 = vld [vmem:[#allocation7 + $0x3c8] sm:$0xff]
    %v844 = vld [vmem:[#allocation7 + $0x3d0] sm:$0xff]
    %v845 = vld [vmem:[#allocation7 + $0x3d8] sm:$0xff]
    %v846 = vld [vmem:[#allocation7 + $0x3e0] sm:$0xff]
    %v847 = vld [vmem:[#allocation7 + $0x3e8] sm:$0xff]
    %v848 = vld [vmem:[#allocation7 + $0x3f0] sm:$0xff]
    %v849 = vld [vmem:[#allocation7 + $0x3f8] sm:$0xff]
    %v850 = vld [vmem:[#allocation7 + $0x400] sm:$0xff]
    %v851 = vld [vmem:[#allocation7 + $0x408] sm:$0xff]
    %v852 = vld [vmem:[#allocation7 + $0x410] sm:$0xff]
    %v853 = vld [vmem:[#allocation7 + $0x418] sm:$0xff]
    %v854 = vld [vmem:[#allocation7 + $0x420] sm:$0xff]
    %v855 = vld [vmem:[#allocation7 + $0x428] sm:$0xff]
    %v856 = vld [vmem:[#allocation7 + $0x430] sm:$0xff]
    %v857 = vld [vmem:[#allocation7 + $0x438] sm:$0xff]
    %v858 = vld [vmem:[#allocation7 + $0x440] sm:$0xff]
    %v859 = vld [vmem:[#allocation7 + $0x448] sm:$0xff]
    %v860 = vld [vmem:[#allocation7 + $0x450] sm:$0xff]
    %v861 = vld [vmem:[#allocation7 + $0x458] sm:$0xff]
    %v862 = vld [vmem:[#allocation7 + $0x460] sm:$0xff]
    %v863 = vld [vmem:[#allocation7 + $0x468] sm:$0xff]
    %v864 = vld [vmem:[#allocation7 + $0x470] sm:$0xff]
    %v865 = vld [vmem:[#allocation7 + $0x478] sm:$0xff]
    %v866 = vld [vmem:[%s6] sm:$0x7]
    %v868 = vlaneseq
    %v869 = vshrl.u32 %v868, 7
    %v870 = vsub.s32 0, %v869
    %v871 = vrot.slane %v866, %v870
    %v872 = vlaneseq
    %v873 = vshrl.u32 %v872, 7
    %v874 = vsub.s32 1, %v873
    %v875 = vrot.slane %v866, %v874
    %v876 = vlaneseq
    %v877 = vshrl.u32 %v876, 7
    %v878 = vsub.s32 2, %v877
    %v879 = vrot.slane %v866, %v878
    %883 = vmatprep.subr.mxu0 %v723
    %884 = vmatpush1.msra.mxu0 %v722
    %885 = vmatprep.subr.mxu0 %v726
    %886 = vmatpush1.msra.mxu0 %v725
    %887 = vmatprep.subr.mxu0 %v729
    %888 = vmatpush1.msra.mxu0 %v728
    %889 = vmatprep.subr.mxu0 %v732
    %890 = vmatpush1.msra.mxu0 %v731
    %891 = vmatprep.subr.mxu0 %v735
    %892 = vmatpush1.msra.mxu0 %v734
    %893 = vmatprep.subr.mxu0 %v738
    %894 = vmatpush1.msra.mxu0 %v737
    %895 = vmatprep.subr.mxu0 %v741
    %896 = vmatpush1.msra.mxu0 %v740
    %897 = vmatprep.subr.mxu0 %v744
    %898 = vmatpush1.msra.mxu0 %v743
    %899 = vmatprep.subr.mxu0 %v747
    %900 = vmatpush1.msra.mxu0 %v746
    %901 = vmatprep.subr.mxu0 %v750
    %902 = vmatpush1.msra.mxu0 %v749
    %903 = vmatprep.subr.mxu0 %v753
    %904 = vmatpush1.msra.mxu0 %v752
    %905 = vmatprep.subr.mxu0 %v756
    %906 = vmatpush1.msra.mxu0 %v755
    %907 = vmatprep.subr.mxu0 %v759
    %908 = vmatpush1.msra.mxu0 %v758
    %909 = vmatprep.subr.mxu0 %v762
    %910 = vmatpush1.msra.mxu0 %v761
    %911 = vmatprep.subr.mxu0 %v765
    %912 = vmatpush1.msra.mxu0 %v764
    %913 = vmatprep.subr.mxu0 %v768
    %914 = vmatpush1.msra.mxu0 %v767
    %915 = vmatprep.subr.mxu0 %v771
    %916 = vmatpush1.msra.mxu0 %v770
    %917 = vmatprep.subr.mxu0 %v774
    %918 = vmatpush1.msra.mxu0 %v773
    %919 = vmatprep.subr.mxu0 %v777
    %920 = vmatpush1.msra.mxu0 %v776
    %921 = vmatprep.subr.mxu0 %v780
    %922 = vmatpush1.msra.mxu0 %v779
    %923 = vmatprep.subr.mxu0 %v783
    %924 = vmatpush1.msra.mxu0 %v782
    %925 = vmatprep.subr.mxu0 %v786
    %926 = vmatpush1.msra.mxu0 %v785
    %927 = vmatprep.subr.mxu0 %v789
    %928 = vmatpush1.msra.mxu0 %v788
    %929 = vmatprep.subr.mxu0 %v792
    %930 = vmatpush1.msra.mxu0 %v791
    %931 = vmatprep.subr.mxu0 %v795
    %932 = vmatpush1.msra.mxu0 %v794
    %933 = vmatprep.subr.mxu0 %v798
    %934 = vmatpush1.msra.mxu0 %v797
    %935 = vmatprep.subr.mxu0 %v801
    %936 = vmatpush1.msra.mxu0 %v800
    %937 = vmatprep.subr.mxu0 %v804
    %938 = vmatpush1.msra.mxu0 %v803
    %939 = vmatprep.subr.mxu0 %v807
    %940 = vmatpush1.msra.mxu0 %v806
    %941 = vmatprep.subr.mxu0 %v810
    %942 = vmatpush1.msra.mxu0 %v809
    %943 = vmatprep.subr.mxu0 %v813
    %944 = vmatpush1.msra.mxu0 %v812
    %945 = vmatprep.subr.mxu0 %v816
    %946 = vmatpush1.msra.mxu0 %v815
    %947 = vmatprep.mubr.f32.mxu0 %v720
    %948 = vmatmul.mubr.f32.gmra.mrb[0].mxu0 %v719
    %v949 = vpop.f32.mrb[0].mxu0
    %v950 = vadd.f32 %v871, %v949
    %v951 = vpop.f32.mrb[0].mxu0
    %v952 = vadd.f32 %v875, %v951
    %953 = vdwg.mxu0
    %954 = vmatprep.subr.mxu0 %v819
    %955 = vmatpush1.msra.mxu0 %v818
    %956 = vmatprep.subr.mxu0 %v822
    %957 = vmatpush1.msra.mxu0 %v821
    %958 = vmatprep.subr.mxu0 %v825
    %959 = vmatpush1.msra.mxu0 %v824
    %960 = vmatprep.subr.mxu0 %v828
    %961 = vmatpush1.msra.mxu0 %v827
    %962 = vmatprep.subr.mxu0 %v831
    %963 = vmatpush1.msra.mxu0 %v830
    %964 = vmatprep.subr.mxu0 %v834
    %965 = vmatpush1.msra.mxu0 %v833
    %966 = vmatprep.subr.mxu0 %v837
    %967 = vmatpush1.msra.mxu0 %v836
    %968 = vmatprep.subr.mxu0 %v840
    %969 = vmatpush1.msra.mxu0 %v839
    %970 = vmatprep.subr.mxu0 %v843
    %971 = vmatpush1.msra.mxu0 %v842
    %972 = vmatprep.subr.mxu0 %v846
    %973 = vmatpush1.msra.mxu0 %v845
    %974 = vmatprep.subr.mxu0 %v849
    %975 = vmatpush1.msra.mxu0 %v848
    %976 = vmatprep.subr.mxu0 %v852
    %977 = vmatpush1.msra.mxu0 %v851
    %978 = vmatprep.subr.mxu0 %v855
    %979 = vmatpush1.msra.mxu0 %v854
    %980 = vmatprep.subr.mxu0 %v858
    %981 = vmatpush1.msra.mxu0 %v857
    %982 = vmatprep.subr.mxu0 %v861
    %983 = vmatpush1.msra.mxu0 %v860
    %984 = vmatprep.subr.mxu0 %v864
    %985 = vmatpush1.msra.mxu0 %v863
    %986 = vmatprep.subr.mxu0 0.0
    %987 = vmatpush1.msra.mxu0 0.0
    %988 = vmatprep.subr.mxu0 0.0
    %989 = vmatpush1.msra.mxu0 0.0
    %990 = vmatprep.subr.mxu0 0.0
    %991 = vmatpush1.msra.mxu0 0.0
    %992 = vmatprep.subr.mxu0 0.0
    %993 = vmatpush1.msra.mxu0 0.0
    %994 = vmatprep.subr.mxu0 0.0
    %995 = vmatpush1.msra.mxu0 0.0
    %996 = vmatprep.subr.mxu0 0.0
    %997 = vmatpush1.msra.mxu0 0.0
    %998 = vmatprep.subr.mxu0 0.0
    %999 = vmatpush1.msra.mxu0 0.0
    %1000 = vmatprep.subr.mxu0 0.0
    %1001 = vmatpush1.msra.mxu0 0.0
    %1002 = vmatprep.subr.mxu0 0.0
    %1003 = vmatpush1.msra.mxu0 0.0
    %1004 = vmatprep.subr.mxu0 0.0
    %1005 = vmatpush1.msra.mxu0 0.0
    %1006 = vmatprep.subr.mxu0 0.0
    %1007 = vmatpush1.msra.mxu0 0.0
    %1008 = vmatprep.subr.mxu0 0.0
    %1009 = vmatpush1.msra.mxu0 0.0
    %1010 = vmatprep.subr.mxu0 0.0
    %1011 = vmatpush1.msra.mxu0 0.0
    %1012 = vmatprep.subr.mxu0 0.0
    %1013 = vmatpush1.msra.mxu0 0.0
    %1014 = vmatprep.subr.mxu0 0.0
    %1015 = vmatpush1.msra.mxu0 0.0
    %1016 = vmatprep.subr.mxu0 0.0
    %1017 = vmatpush1.msra.mxu0 0.0
    %1018 = vmatprep.mubr.f32.mxu0 0.0
    %1019 = vmatmul.mubr.f32.gmra.mrb[0].mxu0 %v721
    %v1020 = vpop.f32.mrb[0].mxu0
    %v1021 = vadd.f32 %v950, %v1020
    %v1022 = vpop.f32.mrb[0].mxu0
    %v1023 = vadd.f32 %v952, %v1022
    %1024 = vdwg.mxu0
    %1025 = vmatprep.subr.mxu0 0.0
    %1026 = vmatpush1.msra.mxu0 %v724
    %1027 = vmatprep.subr.mxu0 0.0
    %1028 = vmatpush1.msra.mxu0 %v727
    %1029 = vmatprep.subr.mxu0 0.0
    %1030 = vmatpush1.msra.mxu0 %v730
    %1031 = vmatprep.subr.mxu0 0.0
    %1032 = vmatpush1.msra.mxu0 %v733
    %1033 = vmatprep.subr.mxu0 0.0
    %1034 = vmatpush1.msra.mxu0 %v736
    %1035 = vmatprep.subr.mxu0 0.0
    %1036 = vmatpush1.msra.mxu0 %v739
    %1037 = vmatprep.subr.mxu0 0.0
    %1038 = vmatpush1.msra.mxu0 %v742
    %1039 = vmatprep.subr.mxu0 0.0
    %1040 = vmatpush1.msra.mxu0 %v745
    %1041 = vmatprep.subr.mxu0 0.0
    %1042 = vmatpush1.msra.mxu0 %v748
    %1043 = vmatprep.subr.mxu0 0.0
    %1044 = vmatpush1.msra.mxu0 %v751
    %1045 = vmatprep.subr.mxu0 0.0
    %1046 = vmatpush1.msra.mxu0 %v754
    %1047 = vmatprep.subr.mxu0 0.0
    %1048 = vmatpush1.msra.mxu0 %v757
    %1049 = vmatprep.subr.mxu0 0.0
    %1050 = vmatpush1.msra.mxu0 %v760
    %1051 = vmatprep.subr.mxu0 0.0
    %1052 = vmatpush1.msra.mxu0 %v763
    %1053 = vmatprep.subr.mxu0 0.0
    %1054 = vmatpush1.msra.mxu0 %v766
    %1055 = vmatprep.subr.mxu0 0.0
    %1056 = vmatpush1.msra.mxu0 %v769
    %1057 = vmatprep.subr.mxu0 0.0
    %1058 = vmatpush1.msra.mxu0 %v772
    %1059 = vmatprep.subr.mxu0 0.0
    %1060 = vmatpush1.msra.mxu0 %v775
    %1061 = vmatprep.subr.mxu0 0.0
    %1062 = vmatpush1.msra.mxu0 %v778
    %1063 = vmatprep.subr.mxu0 0.0
    %1064 = vmatpush1.msra.mxu0 %v781
    %1065 = vmatprep.subr.mxu0 0.0
    %1066 = vmatpush1.msra.mxu0 %v784
    %1067 = vmatprep.subr.mxu0 0.0
    %1068 = vmatpush1.msra.mxu0 %v787
    %1069 = vmatprep.subr.mxu0 0.0
    %1070 = vmatpush1.msra.mxu0 %v790
    %1071 = vmatprep.subr.mxu0 0.0
    %1072 = vmatpush1.msra.mxu0 %v793
    %1073 = vmatprep.subr.mxu0 0.0
    %1074 = vmatpush1.msra.mxu0 %v796
    %1075 = vmatprep.subr.mxu0 0.0
    %1076 = vmatpush1.msra.mxu0 %v799
    %1077 = vmatprep.subr.mxu0 0.0
    %1078 = vmatpush1.msra.mxu0 %v802
    %1079 = vmatprep.subr.mxu0 0.0
    %1080 = vmatpush1.msra.mxu0 %v805
    %1081 = vmatprep.subr.mxu0 0.0
    %1082 = vmatpush1.msra.mxu0 %v808
    %1083 = vmatprep.subr.mxu0 0.0
    %1084 = vmatpush1.msra.mxu0 %v811
    %1085 = vmatprep.subr.mxu0 0.0
    %1086 = vmatpush1.msra.mxu0 %v814
    %1087 = vmatprep.subr.mxu0 0.0
    %1088 = vmatpush1.msra.mxu0 %v817
    %1089 = vmatprep.mubr.f32.mxu0 %v720
    %1090 = vmatmul.mubr.f32.gmra.mrb[0].mxu0 %v719
    %v1091 = vpop.f32.mrb[0].mxu0
    %v1092 = vadd.f32 %v879, %v1091
    %v1093 = vpop.f32.mrb[0].mxu0
    %1094 = vdwg.mxu0
    %1095 = vmatprep.subr.mxu0 0.0
    %1096 = vmatpush1.msra.mxu0 %v820
    %1097 = vmatprep.subr.mxu0 0.0
    %1098 = vmatpush1.msra.mxu0 %v823
    %1099 = vmatprep.subr.mxu0 0.0
    %1100 = vmatpush1.msra.mxu0 %v826
    %1101 = vmatprep.subr.mxu0 0.0
    %1102 = vmatpush1.msra.mxu0 %v829
    %1103 = vmatprep.subr.mxu0 0.0
    %1104 = vmatpush1.msra.mxu0 %v832
    %1105 = vmatprep.subr.mxu0 0.0
    %1106 = vmatpush1.msra.mxu0 %v835
    %1107 = vmatprep.subr.mxu0 0.0
    %1108 = vmatpush1.msra.mxu0 %v838
    %1109 = vmatprep.subr.mxu0 0.0
    %1110 = vmatpush1.msra.mxu0 %v841
    %1111 = vmatprep.subr.mxu0 0.0
    %1112 = vmatpush1.msra.mxu0 %v844
    %1113 = vmatprep.subr.mxu0 0.0
    %1114 = vmatpush1.msra.mxu0 %v847
    %1115 = vmatprep.subr.mxu0 0.0
    %1116 = vmatpush1.msra.mxu0 %v850
    %1117 = vmatprep.subr.mxu0 0.0
    %1118 = vmatpush1.msra.mxu0 %v853
    %1119 = vmatprep.subr.mxu0 0.0
    %1120 = vmatpush1.msra.mxu0 %v856
    %1121 = vmatprep.subr.mxu0 0.0
    %1122 = vmatpush1.msra.mxu0 %v859
    %1123 = vmatprep.subr.mxu0 0.0
    %1124 = vmatpush1.msra.mxu0 %v862
    %1125 = vmatprep.subr.mxu0 0.0
    %1126 = vmatpush1.msra.mxu0 %v865
    %1127 = vmatprep.subr.mxu0 0.0
    %1128 = vmatpush1.msra.mxu0 0.0
    %1129 = vmatprep.subr.mxu0 0.0
    %1130 = vmatpush1.msra.mxu0 0.0
    %1131 = vmatprep.subr.mxu0 0.0
    %1132 = vmatpush1.msra.mxu0 0.0
    %1133 = vmatprep.subr.mxu0 0.0
    %1134 = vmatpush1.msra.mxu0 0.0
    %1135 = vmatprep.subr.mxu0 0.0
    %1136 = vmatpush1.msra.mxu0 0.0
    %1137 = vmatprep.subr.mxu0 0.0
    %1138 = vmatpush1.msra.mxu0 0.0
    %1139 = vmatprep.subr.mxu0 0.0
    %1140 = vmatpush1.msra.mxu0 0.0
    %1141 = vmatprep.subr.mxu0 0.0
    %1142 = vmatpush1.msra.mxu0 0.0
    %1143 = vmatprep.subr.mxu0 0.0
    %1144 = vmatpush1.msra.mxu0 0.0
    %1145 = vmatprep.subr.mxu0 0.0
    %1146 = vmatpush1.msra.mxu0 0.0
    %1147 = vmatprep.subr.mxu0 0.0
    %1148 = vmatpush1.msra.mxu0 0.0
    %1149 = vmatprep.subr.mxu0 0.0
    %1150 = vmatpush1.msra.mxu0 0.0
    %1151 = vmatprep.subr.mxu0 0.0
    %1152 = vmatpush1.msra.mxu0 0.0
    %1153 = vmatprep.subr.mxu0 0.0
    %1154 = vmatpush1.msra.mxu0 0.0
    %1155 = vmatprep.subr.mxu0 0.0
    %1156 = vmatpush1.msra.mxu0 0.0
    %1157 = vmatprep.subr.mxu0 0.0
    %1158 = vmatpush1.msra.mxu0 0.0
    %1159 = vmatprep.mubr.f32.mxu0 0.0
    %1160 = vmatmul.mubr.f32.gmra.mrb[0].mxu0 %v721
    %v1161 = vpop.f32.mrb[0].mxu0
    %v1162 = vadd.f32 %v1092, %v1161
    %v1163 = vpop.f32.mrb[0].mxu0
    %1164 = vdwg.mxu0
    %v1165 = vmax.f32 %v1021, 0.0
    %v1166 = vmax.f32 %v1023, 0.0
    %v1167 = vmax.f32 %v1162, 0.0
    %v1168 = vld [vmem:[#allocation9] sm:$0xff]
    %v1169 = vld [vmem:[#allocation9 + $0x8] sm:$0xff]
    %v1170 = vld [vmem:[#allocation9 + $0x10] sm:$0xff]
    %v1171 = vld [vmem:[#allocation9 + $0x18] sm:$0xff]
    %v1172 = vld [vmem:[#allocation9 + $0x20] sm:$0xff]
    %v1173 = vld [vmem:[#allocation9 + $0x28] sm:$0xff]
    %v1174 = vld [vmem:[#allocation9 + $0x30] sm:$0xff]
    %v1175 = vld [vmem:[#allocation9 + $0x38] sm:$0xff]
    %v1176 = vld [vmem:[#allocation9 + $0x40] sm:$0xff]
    %v1177 = vld [vmem:[#allocation9 + $0x48] sm:$0xff]
    %v1178 = vld [vmem:[#allocation9 + $0x50] sm:$0xff]
    %v1179 = vld [vmem:[#allocation9 + $0x58] sm:$0xff]
    %v1180 = vld [vmem:[#allocation9 + $0x60] sm:$0xff]
    %v1181 = vld [vmem:[#allocation9 + $0x68] sm:$0xff]
    %v1182 = vld [vmem:[#allocation9 + $0x70] sm:$0xff]
    %v1183 = vld [vmem:[#allocation9 + $0x78] sm:$0xff]
    %v1184 = vld [vmem:[#allocation9 + $0x80] sm:$0xff]
    %v1185 = vld [vmem:[#allocation9 + $0x88] sm:$0xff]
    %v1186 = vld [vmem:[#allocation9 + $0x90] sm:$0xff]
    %v1187 = vld [vmem:[#allocation9 + $0x98] sm:$0xff]
    %v1188 = vld [vmem:[#allocation9 + $0xa0] sm:$0xff]
    %v1189 = vld [vmem:[#allocation9 + $0xa8] sm:$0xff]
    %v1190 = vld [vmem:[#allocation9 + $0xb0] sm:$0xff]
    %v1191 = vld [vmem:[#allocation9 + $0xb8] sm:$0xff]
    %v1192 = vld [vmem:[#allocation9 + $0xc0] sm:$0xff]
    %v1193 = vld [vmem:[#allocation9 + $0xc8] sm:$0xff]
    %v1194 = vld [vmem:[#allocation9 + $0xd0] sm:$0xff]
    %v1195 = vld [vmem:[#allocation9 + $0xd8] sm:$0xff]
    %v1196 = vld [vmem:[#allocation9 + $0xe0] sm:$0xff]
    %v1197 = vld [vmem:[#allocation9 + $0xe8] sm:$0xff]
    %v1198 = vld [vmem:[#allocation9 + $0xf0] sm:$0xff]
    %v1199 = vld [vmem:[#allocation9 + $0xf8] sm:$0xff]
    %v1200 = vld [vmem:[#allocation9 + $0x100] sm:$0xff]
    %v1201 = vld [vmem:[#allocation9 + $0x108] sm:$0xff]
    %v1202 = vld [vmem:[#allocation9 + $0x110] sm:$0xff]
    %v1203 = vld [vmem:[#allocation9 + $0x118] sm:$0xff]
    %v1204 = vld [vmem:[#allocation9 + $0x120] sm:$0xff]
    %v1205 = vld [vmem:[#allocation9 + $0x128] sm:$0xff]
    %v1206 = vld [vmem:[#allocation9 + $0x130] sm:$0xff]
    %v1207 = vld [vmem:[#allocation9 + $0x138] sm:$0xff]
    %v1208 = vld [vmem:[#allocation9 + $0x140] sm:$0xff]
    %v1209 = vld [vmem:[#allocation9 + $0x148] sm:$0xff]
    %v1210 = vld [vmem:[#allocation9 + $0x150] sm:$0xff]
    %v1211 = vld [vmem:[#allocation9 + $0x158] sm:$0xff]
    %v1212 = vld [vmem:[#allocation9 + $0x160] sm:$0xff]
    %v1213 = vld [vmem:[#allocation9 + $0x168] sm:$0xff]
    %v1214 = vld [vmem:[#allocation9 + $0x170] sm:$0xff]
    %v1215 = vld [vmem:[#allocation9 + $0x178] sm:$0xff]
    %v1216 = vld [vmem:[%s8] sm:$0x1]
    %v1218 = vlaneseq
    %v1219 = vshrl.u32 %v1218, 7
    %v1220 = vsub.s32 0, %v1219
    %v1221 = vrot.slane %v1216, %v1220
    %1223 = vmatprep.subr.mxu0 0.0
    %1224 = vmatpush1.msra.mxu0 %v1168
    %1225 = vmatprep.subr.mxu0 0.0
    %1226 = vmatpush1.msra.mxu0 %v1169
    %1227 = vmatprep.subr.mxu0 0.0
    %1228 = vmatpush1.msra.mxu0 %v1170
    %1229 = vmatprep.subr.mxu0 0.0
    %1230 = vmatpush1.msra.mxu0 %v1171
    %1231 = vmatprep.subr.mxu0 0.0
    %1232 = vmatpush1.msra.mxu0 %v1172
    %1233 = vmatprep.subr.mxu0 0.0
    %1234 = vmatpush1.msra.mxu0 %v1173
    %1235 = vmatprep.subr.mxu0 0.0
    %1236 = vmatpush1.msra.mxu0 %v1174
    %1237 = vmatprep.subr.mxu0 0.0
    %1238 = vmatpush1.msra.mxu0 %v1175
    %1239 = vmatprep.subr.mxu0 0.0
    %1240 = vmatpush1.msra.mxu0 %v1176
    %1241 = vmatprep.subr.mxu0 0.0
    %1242 = vmatpush1.msra.mxu0 %v1177
    %1243 = vmatprep.subr.mxu0 0.0
    %1244 = vmatpush1.msra.mxu0 %v1178
    %1245 = vmatprep.subr.mxu0 0.0
    %1246 = vmatpush1.msra.mxu0 %v1179
    %1247 = vmatprep.subr.mxu0 0.0
    %1248 = vmatpush1.msra.mxu0 %v1180
    %1249 = vmatprep.subr.mxu0 0.0
    %1250 = vmatpush1.msra.mxu0 %v1181
    %1251 = vmatprep.subr.mxu0 0.0
    %1252 = vmatpush1.msra.mxu0 %v1182
    %1253 = vmatprep.subr.mxu0 0.0
    %1254 = vmatpush1.msra.mxu0 %v1183
    %1255 = vmatprep.subr.mxu0 0.0
    %1256 = vmatpush1.msra.mxu0 %v1184
    %1257 = vmatprep.subr.mxu0 0.0
    %1258 = vmatpush1.msra.mxu0 %v1185
    %1259 = vmatprep.subr.mxu0 0.0
    %1260 = vmatpush1.msra.mxu0 %v1186
    %1261 = vmatprep.subr.mxu0 0.0
    %1262 = vmatpush1.msra.mxu0 %v1187
    %1263 = vmatprep.subr.mxu0 0.0
    %1264 = vmatpush1.msra.mxu0 %v1188
    %1265 = vmatprep.subr.mxu0 0.0
    %1266 = vmatpush1.msra.mxu0 %v1189
    %1267 = vmatprep.subr.mxu0 0.0
    %1268 = vmatpush1.msra.mxu0 %v1190
    %1269 = vmatprep.subr.mxu0 0.0
    %1270 = vmatpush1.msra.mxu0 %v1191
    %1271 = vmatprep.subr.mxu0 0.0
    %1272 = vmatpush1.msra.mxu0 %v1192
    %1273 = vmatprep.subr.mxu0 0.0
    %1274 = vmatpush1.msra.mxu0 %v1193
    %1275 = vmatprep.subr.mxu0 0.0
    %1276 = vmatpush1.msra.mxu0 %v1194
    %1277 = vmatprep.subr.mxu0 0.0
    %1278 = vmatpush1.msra.mxu0 %v1195
    %1279 = vmatprep.subr.mxu0 0.0
    %1280 = vmatpush1.msra.mxu0 %v1196
    %1281 = vmatprep.subr.mxu0 0.0
    %1282 = vmatpush1.msra.mxu0 %v1197
    %1283 = vmatprep.subr.mxu0 0.0
    %1284 = vmatpush1.msra.mxu0 %v1198
    %1285 = vmatprep.subr.mxu0 0.0
    %1286 = vmatpush1.msra.mxu0 %v1199
    %1287 = vmatprep.mubr.f32.mxu0 %v1166
    %1288 = vmatmul.mubr.f32.gmra.mrb[0].mxu0 %v1165
    %v1289 = vpop.f32.mrb[0].mxu0
    %v1290 = vadd.f32 %v1221, %v1289
    %v1291 = vpop.f32.mrb[0].mxu0
    %1292 = vdwg.mxu0
    %1293 = vmatprep.subr.mxu0 0.0
    %1294 = vmatpush1.msra.mxu0 %v1200
    %1295 = vmatprep.subr.mxu0 0.0
    %1296 = vmatpush1.msra.mxu0 %v1201
    %1297 = vmatprep.subr.mxu0 0.0
    %1298 = vmatpush1.msra.mxu0 %v1202
    %1299 = vmatprep.subr.mxu0 0.0
    %1300 = vmatpush1.msra.mxu0 %v1203
    %1301 = vmatprep.subr.mxu0 0.0
    %1302 = vmatpush1.msra.mxu0 %v1204
    %1303 = vmatprep.subr.mxu0 0.0
    %1304 = vmatpush1.msra.mxu0 %v1205
    %1305 = vmatprep.subr.mxu0 0.0
    %1306 = vmatpush1.msra.mxu0 %v1206
    %1307 = vmatprep.subr.mxu0 0.0
    %1308 = vmatpush1.msra.mxu0 %v1207
    %1309 = vmatprep.subr.mxu0 0.0
    %1310 = vmatpush1.msra.mxu0 %v1208
    %1311 = vmatprep.subr.mxu0 0.0
    %1312 = vmatpush1.msra.mxu0 %v1209
    %1313 = vmatprep.subr.mxu0 0.0
    %1314 = vmatpush1.msra.mxu0 %v1210
    %1315 = vmatprep.subr.mxu0 0.0
    %1316 = vmatpush1.msra.mxu0 %v1211
    %1317 = vmatprep.subr.mxu0 0.0
    %1318 = vmatpush1.msra.mxu0 %v1212
    %1319 = vmatprep.subr.mxu0 0.0
    %1320 = vmatpush1.msra.mxu0 %v1213
    %1321 = vmatprep.subr.mxu0 0.0
    %1322 = vmatpush1.msra.mxu0 %v1214
    %1323 = vmatprep.subr.mxu0 0.0
    %1324 = vmatpush1.msra.mxu0 %v1215
    %1325 = vmatprep.subr.mxu0 0.0
    %1326 = vmatpush1.msra.mxu0 0.0
    %1327 = vmatprep.subr.mxu0 0.0
    %1328 = vmatpush1.msra.mxu0 0.0
    %1329 = vmatprep.subr.mxu0 0.0
    %1330 = vmatpush1.msra.mxu0 0.0
    %1331 = vmatprep.subr.mxu0 0.0
    %1332 = vmatpush1.msra.mxu0 0.0
    %1333 = vmatprep.subr.mxu0 0.0
    %1334 = vmatpush1.msra.mxu0 0.0
    %1335 = vmatprep.subr.mxu0 0.0
    %1336 = vmatpush1.msra.mxu0 0.0
    %1337 = vmatprep.subr.mxu0 0.0
    %1338 = vmatpush1.msra.mxu0 0.0
    %1339 = vmatprep.subr.mxu0 0.0
    %1340 = vmatpush1.msra.mxu0 0.0
    %1341 = vmatprep.subr.mxu0 0.0
    %1342 = vmatpush1.msra.mxu0 0.0
    %1343 = vmatprep.subr.mxu0 0.0
    %1344 = vmatpush1.msra.mxu0 0.0
    %1345 = vmatprep.subr.mxu0 0.0
    %1346 = vmatpush1.msra.mxu0 0.0
    %1347 = vmatprep.subr.mxu0 0.0
    %1348 = vmatpush1.msra.mxu0 0.0
    %1349 = vmatprep.subr.mxu0 0.0
    %1350 = vmatpush1.msra.mxu0 0.0
    %1351 = vmatprep.subr.mxu0 0.0
    %1352 = vmatpush1.msra.mxu0 0.0
    %1353 = vmatprep.subr.mxu0 0.0
    %1354 = vmatpush1.msra.mxu0 0.0
    %1355 = vmatprep.subr.mxu0 0.0
    %1356 = vmatpush1.msra.mxu0 0.0
    %1357 = vmatprep.mubr.f32.mxu0 0.0
    %1358 = vmatmul.mubr.f32.gmra.mrb[0].mxu0 %v1167
    %v1359 = vpop.f32.mrb[0].mxu0
    %v1360 = vadd.f32 %v1290, %v1359
    %v1361 = vpop.f32.mrb[0].mxu0
    %1362 = vdwg.mxu0
    %1363 = vst [vmem:[%s9] sm:$0xff] %v1360
    // Predicated region
    $region58: #{dnn_forward.1} parent=1 // pred_check
      _
    $region59: #{dnn_forward.1} parent=1 // pred_check_branch
      %1365 = sbr.rel (0) target = $region61
    $region60: #{dnn_forward.1} parent=1 // pred_region
      _
    $region61: #{dnn_forward.1} parent=1 // pred_fallthru
      _
    // Predicated region
    $region62: #{dnn_forward.1} parent=1 // pred_check
      _
    $region63: #{dnn_forward.1} parent=1 // pred_check_branch
      %1367 = sbr.rel (0) target = $region65
    $region64: #{dnn_forward.1} parent=1 // pred_region
      _
    $region65: #{dnn_forward.1} parent=1 // pred_fallthru
      _
    %1368 = vsyncpa [#allocation3], 1
    %1369 = vsyncpa [#allocation5], 1
    %1370 = vsyncpa [#allocation8], 1

</llo_original>
